<compile_context>
chip_gen: v7x
topology: tpu7x:2x2x1
jax: 0.10.0
libtpu: 0.0.40
codegen_flags: <defaults>
</compile_context>

<pallas_src>
import functools

import jax
import jax.numpy as jnp
from jax import lax
from jax.experimental import pallas as pl
from jax.experimental.pallas import tpu as pltpu


def _leaky_relu(x, slope=0.01):
    return jnp.where(x >= 0, x, slope * x)


def _sigmoid_eup(x):
    # sigmoid(x) == 0.5*(1 + tanh(x/2)); tanh lowers to the EUP slot, avoiding
    # the VALU divide in the default sigmoid lowering.
    return 0.5 * (1.0 + jnp.tanh(0.5 * x))


def _apply_gates(gates, c_prev, H):
    """LSTM gate nonlinearity. `gates` columns are packed (i, f, o, g)."""
    sig = _sigmoid_eup(gates[:, : 3 * H])     # one sigmoid over i|f|o
    g = jnp.tanh(gates[:, 3 * H:])            # one tanh over g
    i = sig[:, :H]
    f = sig[:, H:2 * H]
    o = sig[:, 2 * H:3 * H]
    c_new = f * c_prev + i * g
    h_new = o * jnp.tanh(c_new)
    return h_new, c_new


def lstm_dueling_kernel(x_ref,                       # (T*B, F)   f32
                        wx1_ref, wh1_ref, b1_ref,    # (F,4H) bf16, (H,4H) bf16, (1,4H) f32
                        wx2_ref, wh2_ref, b2_ref,    # (H,4H) bf16, (H,4H) bf16, (1,4H) f32
                        wva_ref, bva_ref,            # (H,HC) bf16, (1,HC) f32   (HC = 128*k)
                        q_ref,                       # (B, HC) f32 output (lane-dense)
                        xg_ref,                      # (T*B, 4H) f32 scratch
                        *, seq_len, batch_padded, hidden, valid_batch,
                        num_actions, unroll):
    H = hidden
    B = batch_padded

    # ---- Hoisted layer-1 input projection for ALL timesteps, with b1 folded in.
    xg_ref[...] = (jnp.dot(x_ref[...].astype(jnp.bfloat16), wx1_ref[...],
                           preferred_element_type=jnp.float32)
                   + b1_ref[...])

    # Loop-invariant operands loaded / broadcast ONCE (outside the unrolled body).
    wh1 = wh1_ref[...]
    wx2 = wx2_ref[...]
    wh2 = wh2_ref[...]
    b2b = jnp.broadcast_to(b2_ref[...], (B, 4 * H))

    zeros = jnp.zeros((B, H), jnp.float32)

    def step(t, carry):
        h1, c1, h2, c2 = carry
        row = pl.multiple_of(t * B, B)
        # Layer 1: recurrent part only (input part + b1 precomputed above).
        g1 = (xg_ref[pl.ds(row, B), :]
              + jnp.dot(h1.astype(jnp.bfloat16), wh1,
                        preferred_element_type=jnp.float32))
        h1, c1 = _apply_gates(g1, c1, H)
        # Layer 2: input is layer-1's fresh hidden state.  (Two K=H dots kept:
        # fusing into one K=2H dot is only a net win for H >= 64.)
        g2 = (jnp.dot(h1.astype(jnp.bfloat16), wx2,
                      preferred_element_type=jnp.float32)
              + jnp.dot(h2.astype(jnp.bfloat16), wh2,
                        preferred_element_type=jnp.float32)
              + b2b)
        h2, c2 = _apply_gates(g2, c2, H)
        return h1, c1, h2, c2

    _, _, h2, _ = lax.fori_loop(0, seq_len, step, (zeros, zeros, zeros, zeros),
                                unroll=unroll)

    # ---- Fused, lane-dense dueling head.
    # Column layout: [A_0 .. A_{NA-1} | V | zero-padded to 128*k].
    va = (jnp.dot(h2.astype(jnp.bfloat16), wva_ref[...],
                  preferred_element_type=jnp.float32)
          + bva_ref[...])
    va = _leaky_relu(va)
    V = va[:, num_actions:num_actions + 1]            # (B, 1)

    # torch.sum(A) reduces over the whole (batch x actions) tensor; mask out
    # padded batch rows and the non-A columns (V column + zero padding).
    col_ids = lax.broadcasted_iota(jnp.int32, va.shape, 1)
    row_ids = lax.broadcasted_iota(jnp.int32, va.shape, 0)
    a_mask = (col_ids < num_actions) & (row_ids < valid_batch)
    a_sum = jnp.sum(jnp.where(a_mask, va, 0.0))

    # Q is correct on columns [0, NA); padded columns hold garbage and are
    # sliced away in the wrapper.  Full-width (128*k lanes) unmasked store.
    q_ref[...] = (V + va + a_sum / num_actions).astype(q_ref.dtype)


def pack_params(p, num_actions, head_cols):
    """Pack raw PyTorch-layout params into the kernel layout (bf16 weights)."""
    H = p["w_hh1"].shape[1]

    def reorder(w):  # rows (i, f, g, o) -> (i, f, o, g) along axis 0
        return jnp.concatenate([w[: 2 * H], w[3 * H:], w[2 * H: 3 * H]], axis=0)

    def wT(w):
        return reorder(w).T.astype(jnp.bfloat16)             # (in, 4H)

    def bias(b_ih, b_hh):
        return (reorder(b_ih) + reorder(b_hh))[None, :].astype(jnp.float32)

    # Lane-dense head: [A | V | zeros] padded to head_cols (multiple of 128).
    pad = head_cols - (num_actions + 1)
    wva = jnp.concatenate(
        [p["w_a"].T, p["w_v"].T, jnp.zeros((H, pad), jnp.float32)], axis=1)
    bva = jnp.concatenate(
        [p["b_a"], p["b_v"], jnp.zeros((pad,), jnp.float32)])[None, :]

    return {
        "wx1": wT(p["w_ih1"]),                               # (F, 4H)
        "wh1": wT(p["w_hh1"]),                               # (H, 4H)
        "b1": bias(p["b_ih1"], p["b_hh1"]),                  # (1, 4H)
        "wx2": wT(p["w_ih2"]),                               # (H, 4H)
        "wh2": wT(p["w_hh2"]),                               # (H, 4H)
        "b2": bias(p["b_ih2"], p["b_hh2"]),                  # (1, 4H)
        "wva": wva.astype(jnp.bfloat16),                     # (H, head_cols)
        "bva": bva.astype(jnp.float32),                      # (1, head_cols)
    }


def lstm_network_forward(x, raw_params, num_actions):
    T, B, F = x.shape
    H = raw_params["w_hh1"].shape[1]

    head_cols = ((num_actions + 1 + 127) // 128) * 128       # lane-dense head width
    p = pack_params(raw_params, num_actions, head_cols)

    # Pad batch to a multiple of 16 sublanes (bf16 packing tile).
    B_pad = max(16, ((B + 15) // 16) * 16)
    if B_pad != B:
        x = jnp.concatenate([x, jnp.zeros((T, B_pad - B, F), x.dtype)], axis=1)
    x2d = x.reshape(T * B_pad, F)

    unroll = max(1, min(8, T))
    kernel = functools.partial(
        lstm_dueling_kernel, seq_len=T, batch_padded=B_pad, hidden=H,
        valid_batch=B, num_actions=num_actions, unroll=unroll)

    vmem = pl.BlockSpec(memory_space=pltpu.MemorySpace.VMEM)

    inputs = (x2d, p["wx1"], p["wh1"], p["b1"], p["wx2"], p["wh2"], p["b2"],
              p["wva"], p["bva"])

    # Size the scoped-VMEM limit from the actual resident footprint (inputs +
    # xg scratch + output) with 2x headroom, instead of relying on the 16/32 MiB
    # default that the whole-sequence-resident design outgrows as T/B/H scale.
    resident = sum(int(a.size) * a.dtype.itemsize for a in inputs)
    resident += T * B_pad * 4 * H * 4          # xg scratch (f32)
    resident += B_pad * head_cols * 4          # output (f32)
    vmem_limit = int(min(128 << 20, max(16 << 20, 2 * resident)))
    # TODO(synk): for long sequences on v7x (64 MiB physical VMEM), switch x to
    # memory_space=pl.ANY and compute the input projection per time-chunk with a
    # double-buffered xg scratch instead of keeping the whole sequence resident.

    q = pl.pallas_call(
        kernel,
        out_shape=jax.ShapeDtypeStruct((B_pad, head_cols), jnp.float32),
        in_specs=[vmem] * len(inputs),
        out_specs=vmem,
        scratch_shapes=[pltpu.VMEM((T * B_pad, 4 * H), jnp.float32)],
        compiler_params=pltpu.CompilerParams(vmem_limit_bytes=vmem_limit),
    )(*inputs)
    return q[:B, :num_actions]


# -------------------- deterministic parameter construction --------------------
def init_params(key, input_size, hidden_size, num_actions):
    """Raw PyTorch-layout parameters (gate order i, f, g, o)."""
    H = hidden_size
    bound = 1.0 / jnp.sqrt(H)

    def u(k, shape):
        return jax.random.uniform(k, shape, jnp.float32, -bound, bound)

    keys = jax.random.split(key, 12)
    return {
        "w_ih1": u(keys[0], (4 * H, input_size)),
        "w_hh1": u(keys[1], (4 * H, H)),
        "b_ih1": u(keys[2], (4 * H,)),
        "b_hh1": u(keys[3], (4 * H,)),
        "w_ih2": u(keys[4], (4 * H, H)),
        "w_hh2": u(keys[5], (4 * H, H)),
        "b_ih2": u(keys[6], (4 * H,)),
        "b_hh2": u(keys[7], (4 * H,)),
        "w_v": u(keys[8], (1, H)),
        "b_v": u(keys[9], (1,)),
        "w_a": u(keys[10], (num_actions, H)),
        "b_a": u(keys[11], (num_actions,)),
    }


# -------------------- pure-JAX reference (for correctness check) --------------
def reference_forward(x, p, num_actions, matmul_dtype=jnp.float32):
    """PyTorch-semantics reference. matmul_dtype=bf16 mimics the kernel's MXU precision."""
    T, B, F = x.shape
    H = p["w_hh1"].shape[1]

    def dot32(a, b):
        return jnp.dot(a.astype(matmul_dtype), b.astype(matmul_dtype),
                       preferred_element_type=jnp.float32)

    def cell(x_t, h, c, w_ih, w_hh, b_ih, b_hh):
        gates = dot32(x_t, w_ih.T) + dot32(h, w_hh.T) + b_ih + b_hh
        i = jax.nn.sigmoid(gates[:, :H])
        f = jax.nn.sigmoid(gates[:, H:2 * H])
        g = jnp.tanh(gates[:, 2 * H:3 * H])
        o = jax.nn.sigmoid(gates[:, 3 * H:])
        c = f * c + i * g
        h = o * jnp.tanh(c)
        return h, c

    h1 = c1 = h2 = c2 = jnp.zeros((B, H), jnp.float32)
    for t in range(T):
        h1, c1 = cell(x[t], h1, c1, p["w_ih1"], p["w_hh1"], p["b_ih1"], p["b_hh1"])
        h2, c2 = cell(h1, h2, c2, p["w_ih2"], p["w_hh2"], p["b_ih2"], p["b_hh2"])

    V = _leaky_relu(dot32(h2, p["w_v"].T) + p["b_v"])
    A = _leaky_relu(dot32(h2, p["w_a"].T) + p["b_a"])
    return V + A + jnp.sum(A) / num_actions


if __name__ == "__main__":
    T, B, F, H, NA = 8, 4, 16, 32, 8

    key = jax.random.PRNGKey(0)
    k_x, k_p = jax.random.split(key)
    x = jax.random.normal(k_x, (T, B, F), jnp.float32)
    raw = init_params(k_p, F, H, NA)

    q = jax.block_until_ready(lstm_network_forward(x, raw, NA))
    assert q.shape == (B, NA)

    # Precision-matched reference (bf16 matmul operands, f32 accumulation) -> tight.
    q_bf16 = reference_forward(x, raw, NA, matmul_dtype=jnp.bfloat16)
    assert jnp.allclose(q, q_bf16, rtol=5e-3, atol=5e-3), (q, q_bf16)

    # Full-precision reference (PyTorch semantics) -> loose, bf16 MXU operands.
    q_f32 = reference_forward(x, raw, NA, matmul_dtype=jnp.float32)
    assert jnp.allclose(q, q_f32, rtol=5e-2, atol=5e-2), (q, q_f32)

    print("KERNEL_OK")
</pallas_src>

<mosaic_0001>
module attributes {stable_mosaic.version = 11 : i64} {
  func.func @lstm_dueling_kernel(%arg0: memref<128x16xf32, #tpu.memory_space<vmem>>, %arg1: memref<16x128xbf16, #tpu.memory_space<vmem>>, %arg2: memref<32x128xbf16, #tpu.memory_space<vmem>>, %arg3: memref<1x128xf32, #tpu.memory_space<vmem>>, %arg4: memref<32x128xbf16, #tpu.memory_space<vmem>>, %arg5: memref<32x128xbf16, #tpu.memory_space<vmem>>, %arg6: memref<1x128xf32, #tpu.memory_space<vmem>>, %arg7: memref<32x128xbf16, #tpu.memory_space<vmem>>, %arg8: memref<1x128xf32, #tpu.memory_space<vmem>>, %arg9: memref<16x128xf32, #tpu.memory_space<vmem>>, %arg10: memref<128x128xf32, #tpu.memory_space<vmem>>) attributes {dimension_semantics = [], scalar_prefetch = 0 : i64, scratch_operands = 1 : i64, tpu.core_type = #tpu.core_type<tc>} {
    %c0 = arith.constant 0 : index
    %c0_0 = arith.constant 0 : index
    %0 = vector.load %arg0[%c0, %c0_0] : memref<128x16xf32, #tpu.memory_space<vmem>>, vector<128x16xf32>
    %1 = arith.truncf %0 : vector<128x16xf32> to vector<128x16xbf16>
    %c0_1 = arith.constant 0 : index
    %c0_2 = arith.constant 0 : index
    %2 = vector.load %arg1[%c0_1, %c0_2] : memref<16x128xbf16, #tpu.memory_space<vmem>>, vector<16x128xbf16>
    %cst = arith.constant dense<0.000000e+00> : vector<128x128xf32>
    %3 = tpu.matmul %1, %2, %cst {dimension_numbers = #tpu.dot_dimension_numbers<[1], [0], [0], [1], [0, 0, 1, 1], [], []>} : vector<128x16xbf16>, vector<16x128xbf16>, vector<128x128xf32> -> vector<128x128xf32>
    %c0_3 = arith.constant 0 : index
    %c0_4 = arith.constant 0 : index
    %4 = vector.load %arg3[%c0_3, %c0_4] : memref<1x128xf32, #tpu.memory_space<vmem>>, vector<1x128xf32>
    %5 = vector.broadcast %4 : vector<1x128xf32> to vector<128x128xf32>
    %6 = arith.addf %3, %5 : vector<128x128xf32>
    %c0_5 = arith.constant 0 : index
    %c0_6 = arith.constant 0 : index
    %7 = vector.load %arg10[%c0_5, %c0_6] : memref<128x128xf32, #tpu.memory_space<vmem>>, vector<128x128xf32>
    tpu.vector_store %arg10[%c0_5, %c0_6], %6 {strides = array<i32>} : memref<128x128xf32, #tpu.memory_space<vmem>>, vector<128x128xf32>,
    %c0_7 = arith.constant 0 : index
    %c0_8 = arith.constant 0 : index
    %8 = vector.load %arg2[%c0_7, %c0_8] : memref<32x128xbf16, #tpu.memory_space<vmem>>, vector<32x128xbf16>
    %c0_9 = arith.constant 0 : index
    %c0_10 = arith.constant 0 : index
    %9 = vector.load %arg4[%c0_9, %c0_10] : memref<32x128xbf16, #tpu.memory_space<vmem>>, vector<32x128xbf16>
    %c0_11 = arith.constant 0 : index
    %c0_12 = arith.constant 0 : index
    %10 = vector.load %arg5[%c0_11, %c0_12] : memref<32x128xbf16, #tpu.memory_space<vmem>>, vector<32x128xbf16>
    %c0_13 = arith.constant 0 : index
    %c0_14 = arith.constant 0 : index
    %11 = vector.load %arg6[%c0_13, %c0_14] : memref<1x128xf32, #tpu.memory_space<vmem>>, vector<1x128xf32>
    %12 = vector.shape_cast %11 : vector<1x128xf32> to vector<1x128xf32>
    %13 = vector.broadcast %12 : vector<1x128xf32> to vector<16x128xf32>
    %cst_15 = arith.constant 0.000000e+00 : f32
    %14 = vector.broadcast %cst_15 : f32 to vector<16x32xf32>
    %c0_i32 = arith.constant 0 : i32
    %c16_i32 = arith.constant 16 : i32
    %15 = arith.muli %c0_i32, %c16_i32 : i32
    %16 = tpu.assume_multiple %15, 16 : i32
    %17 = arith.index_cast %16 : i32 to index
    %c0_16 = arith.constant 0 : index
    %18 = vector.load %arg10[%17, %c0_16] : memref<128x128xf32, #tpu.memory_space<vmem>>, vector<16x128xf32>
    %19 = arith.truncf %14 : vector<16x32xf32> to vector<16x32xbf16>
    %cst_17 = arith.constant dense<0.000000e+00> : vector<16x128xf32>
    %20 = tpu.matmul %19, %8, %cst_17 {dimension_numbers = #tpu.dot_dimension_numbers<[1], [0], [0], [1], [0, 0, 1, 1], [], []>} : vector<16x32xbf16>, vector<32x128xbf16>, vector<16x128xf32> -> vector<16x128xf32>
    %21 = arith.addf %18, %20 : vector<16x128xf32>
    %22 = vector.extract_strided_slice %21 {offsets = [0, 0], sizes = [16, 96], strides = [1, 1]} : vector<16x128xf32> to vector<16x96xf32>
    %cst_18 = arith.constant 5.000000e-01 : f32
    %23 = vector.broadcast %cst_18 : f32 to vector<16x96xf32>
    %24 = arith.mulf %23, %22 : vector<16x96xf32>
    %25 = math.tanh %24 : vector<16x96xf32>
    %cst_19 = arith.constant 1.000000e+00 : f32
    %26 = vector.broadcast %cst_19 : f32 to vector<16x96xf32>
    %27 = arith.addf %26, %25 : vector<16x96xf32>
    %cst_20 = arith.constant 5.000000e-01 : f32
    %28 = vector.broadcast %cst_20 : f32 to vector<16x96xf32>
    %29 = arith.mulf %28, %27 : vector<16x96xf32>
    %30 = vector.extract_strided_slice %21 {offsets = [0, 96], sizes = [16, 32], strides = [1, 1]} : vector<16x128xf32> to vector<16x32xf32>
    %31 = math.tanh %30 : vector<16x32xf32>
    %32 = vector.extract_strided_slice %29 {offsets = [0, 0], sizes = [16, 32], strides = [1, 1]} : vector<16x96xf32> to vector<16x32xf32>
    %33 = vector.extract_strided_slice %29 {offsets = [0, 32], sizes = [16, 32], strides = [1, 1]} : vector<16x96xf32> to vector<16x32xf32>
    %34 = vector.extract_strided_slice %29 {offsets = [0, 64], sizes = [16, 32], strides = [1, 1]} : vector<16x96xf32> to vector<16x32xf32>
    %35 = arith.mulf %33, %14 : vector<16x32xf32>
    %36 = arith.mulf %32, %31 : vector<16x32xf32>
    %37 = arith.addf %35, %36 : vector<16x32xf32>
    %38 = math.tanh %37 : vector<16x32xf32>
    %39 = arith.mulf %34, %38 : vector<16x32xf32>
    %40 = arith.truncf %39 : vector<16x32xf32> to vector<16x32xbf16>
    %cst_21 = arith.constant dense<0.000000e+00> : vector<16x128xf32>
    %41 = tpu.matmul %40, %9, %cst_21 {dimension_numbers = #tpu.dot_dimension_numbers<[1], [0], [0], [1], [0, 0, 1, 1], [], []>} : vector<16x32xbf16>, vector<32x128xbf16>, vector<16x128xf32> -> vector<16x128xf32>
    %42 = arith.truncf %14 : vector<16x32xf32> to vector<16x32xbf16>
    %cst_22 = arith.constant dense<0.000000e+00> : vector<16x128xf32>
    %43 = tpu.matmul %42, %10, %cst_22 {dimension_numbers = #tpu.dot_dimension_numbers<[1], [0], [0], [1], [0, 0, 1, 1], [], []>} : vector<16x32xbf16>, vector<32x128xbf16>, vector<16x128xf32> -> vector<16x128xf32>
    %44 = arith.addf %41, %43 : vector<16x128xf32>
    %45 = arith.addf %44, %13 : vector<16x128xf32>
    %46 = vector.extract_strided_slice %45 {offsets = [0, 0], sizes = [16, 96], strides = [1, 1]} : vector<16x128xf32> to vector<16x96xf32>
    %cst_23 = arith.constant 5.000000e-01 : f32
    %47 = vector.broadcast %cst_23 : f32 to vector<16x96xf32>
    %48 = arith.mulf %47, %46 : vector<16x96xf32>
    %49 = math.tanh %48 : vector<16x96xf32>
    %cst_24 = arith.constant 1.000000e+00 : f32
    %50 = vector.broadcast %cst_24 : f32 to vector<16x96xf32>
    %51 = arith.addf %50, %49 : vector<16x96xf32>
    %cst_25 = arith.constant 5.000000e-01 : f32
    %52 = vector.broadcast %cst_25 : f32 to vector<16x96xf32>
    %53 = arith.mulf %52, %51 : vector<16x96xf32>
    %54 = vector.extract_strided_slice %45 {offsets = [0, 96], sizes = [16, 32], strides = [1, 1]} : vector<16x128xf32> to vector<16x32xf32>
    %55 = math.tanh %54 : vector<16x32xf32>
    %56 = vector.extract_strided_slice %53 {offsets = [0, 0], sizes = [16, 32], strides = [1, 1]} : vector<16x96xf32> to vector<16x32xf32>
    %57 = vector.extract_strided_slice %53 {offsets = [0, 32], sizes = [16, 32], strides = [1, 1]} : vector<16x96xf32> to vector<16x32xf32>
    %58 = vector.extract_strided_slice %53 {offsets = [0, 64], sizes = [16, 32], strides = [1, 1]} : vector<16x96xf32> to vector<16x32xf32>
    %59 = arith.mulf %57, %14 : vector<16x32xf32>
    %60 = arith.mulf %56, %55 : vector<16x32xf32>
    %61 = arith.addf %59, %60 : vector<16x32xf32>
    %62 = math.tanh %61 : vector<16x32xf32>
    %63 = arith.mulf %58, %62 : vector<16x32xf32>
    %c1_i32 = arith.constant 1 : i32
    %c16_i32_26 = arith.constant 16 : i32
    %64 = arith.muli %c1_i32, %c16_i32_26 : i32
    %65 = tpu.assume_multiple %64, 16 : i32
    %66 = arith.index_cast %65 : i32 to index
    %c0_27 = arith.constant 0 : index
    %67 = vector.load %arg10[%66, %c0_27] : memref<128x128xf32, #tpu.memory_space<vmem>>, vector<16x128xf32>
    %68 = arith.truncf %39 : vector<16x32xf32> to vector<16x32xbf16>
    %cst_28 = arith.constant dense<0.000000e+00> : vector<16x128xf32>
    %69 = tpu.matmul %68, %8, %cst_28 {dimension_numbers = #tpu.dot_dimension_numbers<[1], [0], [0], [1], [0, 0, 1, 1], [], []>} : vector<16x32xbf16>, vector<32x128xbf16>, vector<16x128xf32> -> vector<16x128xf32>
    %70 = arith.addf %67, %69 : vector<16x128xf32>
    %71 = vector.extract_strided_slice %70 {offsets = [0, 0], sizes = [16, 96], strides = [1, 1]} : vector<16x128xf32> to vector<16x96xf32>
    %cst_29 = arith.constant 5.000000e-01 : f32
    %72 = vector.broadcast %cst_29 : f32 to vector<16x96xf32>
    %73 = arith.mulf %72, %71 : vector<16x96xf32>
    %74 = math.tanh %73 : vector<16x96xf32>
    %cst_30 = arith.constant 1.000000e+00 : f32
    %75 = vector.broadcast %cst_30 : f32 to vector<16x96xf32>
    %76 = arith.addf %75, %74 : vector<16x96xf32>
    %cst_31 = arith.constant 5.000000e-01 : f32
    %77 = vector.broadcast %cst_31 : f32 to vector<16x96xf32>
    %78 = arith.mulf %77, %76 : vector<16x96xf32>
    %79 = vector.extract_strided_slice %70 {offsets = [0, 96], sizes = [16, 32], strides = [1, 1]} : vector<16x128xf32> to vector<16x32xf32>
    %80 = math.tanh %79 : vector<16x32xf32>
    %81 = vector.extract_strided_slice %78 {offsets = [0, 0], sizes = [16, 32], strides = [1, 1]} : vector<16x96xf32> to vector<16x32xf32>
    %82 = vector.extract_strided_slice %78 {offsets = [0, 32], sizes = [16, 32], strides = [1, 1]} : vector<16x96xf32> to vector<16x32xf32>
    %83 = vector.extract_strided_slice %78 {offsets = [0, 64], sizes = [16, 32], strides = [1, 1]} : vector<16x96xf32> to vector<16x32xf32>
    %84 = arith.mulf %82, %37 : vector<16x32xf32>
    %85 = arith.mulf %81, %80 : vector<16x32xf32>
    %86 = arith.addf %84, %85 : vector<16x32xf32>
    %87 = math.tanh %86 : vector<16x32xf32>
    %88 = arith.mulf %83, %87 : vector<16x32xf32>
    %89 = arith.truncf %88 : vector<16x32xf32> to vector<16x32xbf16>
    %cst_32 = arith.constant dense<0.000000e+00> : vector<16x128xf32>
    %90 = tpu.matmul %89, %9, %cst_32 {dimension_numbers = #tpu.dot_dimension_numbers<[1], [0], [0], [1], [0, 0, 1, 1], [], []>} : vector<16x32xbf16>, vector<32x128xbf16>, vector<16x128xf32> -> vector<16x128xf32>
    %91 = arith.truncf %63 : vector<16x32xf32> to vector<16x32xbf16>
    %cst_33 = arith.constant dense<0.000000e+00> : vector<16x128xf32>
    %92 = tpu.matmul %91, %10, %cst_33 {dimension_numbers = #tpu.dot_dimension_numbers<[1], [0], [0], [1], [0, 0, 1, 1], [], []>} : vector<16x32xbf16>, vector<32x128xbf16>, vector<16x128xf32> -> vector<16x128xf32>
    %93 = arith.addf %90, %92 : vector<16x128xf32>
    %94 = arith.addf %93, %13 : vector<16x128xf32>
    %95 = vector.extract_strided_slice %94 {offsets = [0, 0], sizes = [16, 96], strides = [1, 1]} : vector<16x128xf32> to vector<16x96xf32>
    %cst_34 = arith.constant 5.000000e-01 : f32
    %96 = vector.broadcast %cst_34 : f32 to vector<16x96xf32>
    %97 = arith.mulf %96, %95 : vector<16x96xf32>
    %98 = math.tanh %97 : vector<16x96xf32>
    %cst_35 = arith.constant 1.000000e+00 : f32
    %99 = vector.broadcast %cst_35 : f32 to vector<16x96xf32>
    %100 = arith.addf %99, %98 : vector<16x96xf32>
    %cst_36 = arith.constant 5.000000e-01 : f32
    %101 = vector.broadcast %cst_36 : f32 to vector<16x96xf32>
    %102 = arith.mulf %101, %100 : vector<16x96xf32>
    %103 = vector.extract_strided_slice %94 {offsets = [0, 96], sizes = [16, 32], strides = [1, 1]} : vector<16x128xf32> to vector<16x32xf32>
    %104 = math.tanh %103 : vector<16x32xf32>
    %105 = vector.extract_strided_slice %102 {offsets = [0, 0], sizes = [16, 32], strides = [1, 1]} : vector<16x96xf32> to vector<16x32xf32>
    %106 = vector.extract_strided_slice %102 {offsets = [0, 32], sizes = [16, 32], strides = [1, 1]} : vector<16x96xf32> to vector<16x32xf32>
    %107 = vector.extract_strided_slice %102 {offsets = [0, 64], sizes = [16, 32], strides = [1, 1]} : vector<16x96xf32> to vector<16x32xf32>
    %108 = arith.mulf %106, %61 : vector<16x32xf32>
    %109 = arith.mulf %105, %104 : vector<16x32xf32>
    %110 = arith.addf %108, %109 : vector<16x32xf32>
    %111 = math.tanh %110 : vector<16x32xf32>
    %112 = arith.mulf %107, %111 : vector<16x32xf32>
    %c2_i32 = arith.constant 2 : i32
    %c16_i32_37 = arith.constant 16 : i32
    %113 = arith.muli %c2_i32, %c16_i32_37 : i32
    %114 = tpu.assume_multiple %113, 16 : i32
    %115 = arith.index_cast %114 : i32 to index
    %c0_38 = arith.constant 0 : index
    %116 = vector.load %arg10[%115, %c0_38] : memref<128x128xf32, #tpu.memory_space<vmem>>, vector<16x128xf32>
    %117 = arith.truncf %88 : vector<16x32xf32> to vector<16x32xbf16>
    %cst_39 = arith.constant dense<0.000000e+00> : vector<16x128xf32>
    %118 = tpu.matmul %117, %8, %cst_39 {dimension_numbers = #tpu.dot_dimension_numbers<[1], [0], [0], [1], [0, 0, 1, 1], [], []>} : vector<16x32xbf16>, vector<32x128xbf16>, vector<16x128xf32> -> vector<16x128xf32>
    %119 = arith.addf %116, %118 : vector<16x128xf32>
    %120 = vector.extract_strided_slice %119 {offsets = [0, 0], sizes = [16, 96], strides = [1, 1]} : vector<16x128xf32> to vector<16x96xf32>
    %cst_40 = arith.constant 5.000000e-01 : f32
    %121 = vector.broadcast %cst_40 : f32 to vector<16x96xf32>
    %122 = arith.mulf %121, %120 : vector<16x96xf32>
    %123 = math.tanh %122 : vector<16x96xf32>
    %cst_41 = arith.constant 1.000000e+00 : f32
    %124 = vector.broadcast %cst_41 : f32 to vector<16x96xf32>
    %125 = arith.addf %124, %123 : vector<16x96xf32>
    %cst_42 = arith.constant 5.000000e-01 : f32
    %126 = vector.broadcast %cst_42 : f32 to vector<16x96xf32>
    %127 = arith.mulf %126, %125 : vector<16x96xf32>
    %128 = vector.extract_strided_slice %119 {offsets = [0, 96], sizes = [16, 32], strides = [1, 1]} : vector<16x128xf32> to vector<16x32xf32>
    %129 = math.tanh %128 : vector<16x32xf32>
    %130 = vector.extract_strided_slice %127 {offsets = [0, 0], sizes = [16, 32], strides = [1, 1]} : vector<16x96xf32> to vector<16x32xf32>
    %131 = vector.extract_strided_slice %127 {offsets = [0, 32], sizes = [16, 32], strides = [1, 1]} : vector<16x96xf32> to vector<16x32xf32>
    %132 = vector.extract_strided_slice %127 {offsets = [0, 64], sizes = [16, 32], strides = [1, 1]} : vector<16x96xf32> to vector<16x32xf32>
    %133 = arith.mulf %131, %86 : vector<16x32xf32>
    %134 = arith.mulf %130, %129 : vector<16x32xf32>
    %135 = arith.addf %133, %134 : vector<16x32xf32>
    %136 = math.tanh %135 : vector<16x32xf32>
    %137 = arith.mulf %132, %136 : vector<16x32xf32>
    %138 = arith.truncf %137 : vector<16x32xf32> to vector<16x32xbf16>
    %cst_43 = arith.constant dense<0.000000e+00> : vector<16x128xf32>
    %139 = tpu.matmul %138, %9, %cst_43 {dimension_numbers = #tpu.dot_dimension_numbers<[1], [0], [0], [1], [0, 0, 1, 1], [], []>} : vector<16x32xbf16>, vector<32x128xbf16>, vector<16x128xf32> -> vector<16x128xf32>
    %140 = arith.truncf %112 : vector<16x32xf32> to vector<16x32xbf16>
    %cst_44 = arith.constant dense<0.000000e+00> : vector<16x128xf32>
    %141 = tpu.matmul %140, %10, %cst_44 {dimension_numbers = #tpu.dot_dimension_numbers<[1], [0], [0], [1], [0, 0, 1, 1], [], []>} : vector<16x32xbf16>, vector<32x128xbf16>, vector<16x128xf32> -> vector<16x128xf32>
    %142 = arith.addf %139, %141 : vector<16x128xf32>
    %143 = arith.addf %142, %13 : vector<16x128xf32>
    %144 = vector.extract_strided_slice %143 {offsets = [0, 0], sizes = [16, 96], strides = [1, 1]} : vector<16x128xf32> to vector<16x96xf32>
    %cst_45 = arith.constant 5.000000e-01 : f32
    %145 = vector.broadcast %cst_45 : f32 to vector<16x96xf32>
    %146 = arith.mulf %145, %144 : vector<16x96xf32>
    %147 = math.tanh %146 : vector<16x96xf32>
    %cst_46 = arith.constant 1.000000e+00 : f32
    %148 = vector.broadcast %cst_46 : f32 to vector<16x96xf32>
    %149 = arith.addf %148, %147 : vector<16x96xf32>
    %cst_47 = arith.constant 5.000000e-01 : f32
    %150 = vector.broadcast %cst_47 : f32 to vector<16x96xf32>
    %151 = arith.mulf %150, %149 : vector<16x96xf32>
    %152 = vector.extract_strided_slice %143 {offsets = [0, 96], sizes = [16, 32], strides = [1, 1]} : vector<16x128xf32> to vector<16x32xf32>
    %153 = math.tanh %152 : vector<16x32xf32>
    %154 = vector.extract_strided_slice %151 {offsets = [0, 0], sizes = [16, 32], strides = [1, 1]} : vector<16x96xf32> to vector<16x32xf32>
    %155 = vector.extract_strided_slice %151 {offsets = [0, 32], sizes = [16, 32], strides = [1, 1]} : vector<16x96xf32> to vector<16x32xf32>
    %156 = vector.extract_strided_slice %151 {offsets = [0, 64], sizes = [16, 32], strides = [1, 1]} : vector<16x96xf32> to vector<16x32xf32>
    %157 = arith.mulf %155, %110 : vector<16x32xf32>
    %158 = arith.mulf %154, %153 : vector<16x32xf32>
    %159 = arith.addf %157, %158 : vector<16x32xf32>
    %160 = math.tanh %159 : vector<16x32xf32>
    %161 = arith.mulf %156, %160 : vector<16x32xf32>
    %c3_i32 = arith.constant 3 : i32
    %c16_i32_48 = arith.constant 16 : i32
    %162 = arith.muli %c3_i32, %c16_i32_48 : i32
    %163 = tpu.assume_multiple %162, 16 : i32
    %164 = arith.index_cast %163 : i32 to index
    %c0_49 = arith.constant 0 : index
    %165 = vector.load %arg10[%164, %c0_49] : memref<128x128xf32, #tpu.memory_space<vmem>>, vector<16x128xf32>
    %166 = arith.truncf %137 : vector<16x32xf32> to vector<16x32xbf16>
    %cst_50 = arith.constant dense<0.000000e+00> : vector<16x128xf32>
    %167 = tpu.matmul %166, %8, %cst_50 {dimension_numbers = #tpu.dot_dimension_numbers<[1], [0], [0], [1], [0, 0, 1, 1], [], []>} : vector<16x32xbf16>, vector<32x128xbf16>, vector<16x128xf32> -> vector<16x128xf32>
    %168 = arith.addf %165, %167 : vector<16x128xf32>
    %169 = vector.extract_strided_slice %168 {offsets = [0, 0], sizes = [16, 96], strides = [1, 1]} : vector<16x128xf32> to vector<16x96xf32>
    %cst_51 = arith.constant 5.000000e-01 : f32
    %170 = vector.broadcast %cst_51 : f32 to vector<16x96xf32>
    %171 = arith.mulf %170, %169 : vector<16x96xf32>
    %172 = math.tanh %171 : vector<16x96xf32>
    %cst_52 = arith.constant 1.000000e+00 : f32
    %173 = vector.broadcast %cst_52 : f32 to vector<16x96xf32>
    %174 = arith.addf %173, %172 : vector<16x96xf32>
    %cst_53 = arith.constant 5.000000e-01 : f32
    %175 = vector.broadcast %cst_53 : f32 to vector<16x96xf32>
    %176 = arith.mulf %175, %174 : vector<16x96xf32>
    %177 = vector.extract_strided_slice %168 {offsets = [0, 96], sizes = [16, 32], strides = [1, 1]} : vector<16x128xf32> to vector<16x32xf32>
    %178 = math.tanh %177 : vector<16x32xf32>
    %179 = vector.extract_strided_slice %176 {offsets = [0, 0], sizes = [16, 32], strides = [1, 1]} : vector<16x96xf32> to vector<16x32xf32>
    %180 = vector.extract_strided_slice %176 {offsets = [0, 32], sizes = [16, 32], strides = [1, 1]} : vector<16x96xf32> to vector<16x32xf32>
    %181 = vector.extract_strided_slice %176 {offsets = [0, 64], sizes = [16, 32], strides = [1, 1]} : vector<16x96xf32> to vector<16x32xf32>
    %182 = arith.mulf %180, %135 : vector<16x32xf32>
    %183 = arith.mulf %179, %178 : vector<16x32xf32>
    %184 = arith.addf %182, %183 : vector<16x32xf32>
    %185 = math.tanh %184 : vector<16x32xf32>
    %186 = arith.mulf %181, %185 : vector<16x32xf32>
    %187 = arith.truncf %186 : vector<16x32xf32> to vector<16x32xbf16>
    %cst_54 = arith.constant dense<0.000000e+00> : vector<16x128xf32>
    %188 = tpu.matmul %187, %9, %cst_54 {dimension_numbers = #tpu.dot_dimension_numbers<[1], [0], [0], [1], [0, 0, 1, 1], [], []>} : vector<16x32xbf16>, vector<32x128xbf16>, vector<16x128xf32> -> vector<16x128xf32>
    %189 = arith.truncf %161 : vector<16x32xf32> to vector<16x32xbf16>
    %cst_55 = arith.constant dense<0.000000e+00> : vector<16x128xf32>
    %190 = tpu.matmul %189, %10, %cst_55 {dimension_numbers = #tpu.dot_dimension_numbers<[1], [0], [0], [1], [0, 0, 1, 1], [], []>} : vector<16x32xbf16>, vector<32x128xbf16>, vector<16x128xf32> -> vector<16x128xf32>
    %191 = arith.addf %188, %190 : vector<16x128xf32>
    %192 = arith.addf %191, %13 : vector<16x128xf32>
    %193 = vector.extract_strided_slice %192 {offsets = [0, 0], sizes = [16, 96], strides = [1, 1]} : vector<16x128xf32> to vector<16x96xf32>
    %cst_56 = arith.constant 5.000000e-01 : f32
    %194 = vector.broadcast %cst_56 : f32 to vector<16x96xf32>
    %195 = arith.mulf %194, %193 : vector<16x96xf32>
    %196 = math.tanh %195 : vector<16x96xf32>
    %cst_57 = arith.constant 1.000000e+00 : f32
    %197 = vector.broadcast %cst_57 : f32 to vector<16x96xf32>
    %198 = arith.addf %197, %196 : vector<16x96xf32>
    %cst_58 = arith.constant 5.000000e-01 : f32
    %199 = vector.broadcast %cst_58 : f32 to vector<16x96xf32>
    %200 = arith.mulf %199, %198 : vector<16x96xf32>
    %201 = vector.extract_strided_slice %192 {offsets = [0, 96], sizes = [16, 32], strides = [1, 1]} : vector<16x128xf32> to vector<16x32xf32>
    %202 = math.tanh %201 : vector<16x32xf32>
    %203 = vector.extract_strided_slice %200 {offsets = [0, 0], sizes = [16, 32], strides = [1, 1]} : vector<16x96xf32> to vector<16x32xf32>
    %204 = vector.extract_strided_slice %200 {offsets = [0, 32], sizes = [16, 32], strides = [1, 1]} : vector<16x96xf32> to vector<16x32xf32>
    %205 = vector.extract_strided_slice %200 {offsets = [0, 64], sizes = [16, 32], strides = [1, 1]} : vector<16x96xf32> to vector<16x32xf32>
    %206 = arith.mulf %204, %159 : vector<16x32xf32>
    %207 = arith.mulf %203, %202 : vector<16x32xf32>
    %208 = arith.addf %206, %207 : vector<16x32xf32>
    %209 = math.tanh %208 : vector<16x32xf32>
    %210 = arith.mulf %205, %209 : vector<16x32xf32>
    %c4_i32 = arith.constant 4 : i32
    %c16_i32_59 = arith.constant 16 : i32
    %211 = arith.muli %c4_i32, %c16_i32_59 : i32
    %212 = tpu.assume_multiple %211, 16 : i32
    %213 = arith.index_cast %212 : i32 to index
    %c0_60 = arith.constant 0 : index
    %214 = vector.load %arg10[%213, %c0_60] : memref<128x128xf32, #tpu.memory_space<vmem>>, vector<16x128xf32>
    %215 = arith.truncf %186 : vector<16x32xf32> to vector<16x32xbf16>
    %cst_61 = arith.constant dense<0.000000e+00> : vector<16x128xf32>
    %216 = tpu.matmul %215, %8, %cst_61 {dimension_numbers = #tpu.dot_dimension_numbers<[1], [0], [0], [1], [0, 0, 1, 1], [], []>} : vector<16x32xbf16>, vector<32x128xbf16>, vector<16x128xf32> -> vector<16x128xf32>
    %217 = arith.addf %214, %216 : vector<16x128xf32>
    %218 = vector.extract_strided_slice %217 {offsets = [0, 0], sizes = [16, 96], strides = [1, 1]} : vector<16x128xf32> to vector<16x96xf32>
    %cst_62 = arith.constant 5.000000e-01 : f32
    %219 = vector.broadcast %cst_62 : f32 to vector<16x96xf32>
    %220 = arith.mulf %219, %218 : vector<16x96xf32>
    %221 = math.tanh %220 : vector<16x96xf32>
    %cst_63 = arith.constant 1.000000e+00 : f32
    %222 = vector.broadcast %cst_63 : f32 to vector<16x96xf32>
    %223 = arith.addf %222, %221 : vector<16x96xf32>
    %cst_64 = arith.constant 5.000000e-01 : f32
    %224 = vector.broadcast %cst_64 : f32 to vector<16x96xf32>
    %225 = arith.mulf %224, %223 : vector<16x96xf32>
    %226 = vector.extract_strided_slice %217 {offsets = [0, 96], sizes = [16, 32], strides = [1, 1]} : vector<16x128xf32> to vector<16x32xf32>
    %227 = math.tanh %226 : vector<16x32xf32>
    %228 = vector.extract_strided_slice %225 {offsets = [0, 0], sizes = [16, 32], strides = [1, 1]} : vector<16x96xf32> to vector<16x32xf32>
    %229 = vector.extract_strided_slice %225 {offsets = [0, 32], sizes = [16, 32], strides = [1, 1]} : vector<16x96xf32> to vector<16x32xf32>
    %230 = vector.extract_strided_slice %225 {offsets = [0, 64], sizes = [16, 32], strides = [1, 1]} : vector<16x96xf32> to vector<16x32xf32>
    %231 = arith.mulf %229, %184 : vector<16x32xf32>
    %232 = arith.mulf %228, %227 : vector<16x32xf32>
    %233 = arith.addf %231, %232 : vector<16x32xf32>
    %234 = math.tanh %233 : vector<16x32xf32>
    %235 = arith.mulf %230, %234 : vector<16x32xf32>
    %236 = arith.truncf %235 : vector<16x32xf32> to vector<16x32xbf16>
    %cst_65 = arith.constant dense<0.000000e+00> : vector<16x128xf32>
    %237 = tpu.matmul %236, %9, %cst_65 {dimension_numbers = #tpu.dot_dimension_numbers<[1], [0], [0], [1], [0, 0, 1, 1], [], []>} : vector<16x32xbf16>, vector<32x128xbf16>, vector<16x128xf32> -> vector<16x128xf32>
    %238 = arith.truncf %210 : vector<16x32xf32> to vector<16x32xbf16>
    %cst_66 = arith.constant dense<0.000000e+00> : vector<16x128xf32>
    %239 = tpu.matmul %238, %10, %cst_66 {dimension_numbers = #tpu.dot_dimension_numbers<[1], [0], [0], [1], [0, 0, 1, 1], [], []>} : vector<16x32xbf16>, vector<32x128xbf16>, vector<16x128xf32> -> vector<16x128xf32>
    %240 = arith.addf %237, %239 : vector<16x128xf32>
    %241 = arith.addf %240, %13 : vector<16x128xf32>
    %242 = vector.extract_strided_slice %241 {offsets = [0, 0], sizes = [16, 96], strides = [1, 1]} : vector<16x128xf32> to vector<16x96xf32>
    %cst_67 = arith.constant 5.000000e-01 : f32
    %243 = vector.broadcast %cst_67 : f32 to vector<16x96xf32>
    %244 = arith.mulf %243, %242 : vector<16x96xf32>
    %245 = math.tanh %244 : vector<16x96xf32>
    %cst_68 = arith.constant 1.000000e+00 : f32
    %246 = vector.broadcast %cst_68 : f32 to vector<16x96xf32>
    %247 = arith.addf %246, %245 : vector<16x96xf32>
    %cst_69 = arith.constant 5.000000e-01 : f32
    %248 = vector.broadcast %cst_69 : f32 to vector<16x96xf32>
    %249 = arith.mulf %248, %247 : vector<16x96xf32>
    %250 = vector.extract_strided_slice %241 {offsets = [0, 96], sizes = [16, 32], strides = [1, 1]} : vector<16x128xf32> to vector<16x32xf32>
    %251 = math.tanh %250 : vector<16x32xf32>
    %252 = vector.extract_strided_slice %249 {offsets = [0, 0], sizes = [16, 32], strides = [1, 1]} : vector<16x96xf32> to vector<16x32xf32>
    %253 = vector.extract_strided_slice %249 {offsets = [0, 32], sizes = [16, 32], strides = [1, 1]} : vector<16x96xf32> to vector<16x32xf32>
    %254 = vector.extract_strided_slice %249 {offsets = [0, 64], sizes = [16, 32], strides = [1, 1]} : vector<16x96xf32> to vector<16x32xf32>
    %255 = arith.mulf %253, %208 : vector<16x32xf32>
    %256 = arith.mulf %252, %251 : vector<16x32xf32>
    %257 = arith.addf %255, %256 : vector<16x32xf32>
    %258 = math.tanh %257 : vector<16x32xf32>
    %259 = arith.mulf %254, %258 : vector<16x32xf32>
    %c5_i32 = arith.constant 5 : i32
    %c16_i32_70 = arith.constant 16 : i32
    %260 = arith.muli %c5_i32, %c16_i32_70 : i32
    %261 = tpu.assume_multiple %260, 16 : i32
    %262 = arith.index_cast %261 : i32 to index
    %c0_71 = arith.constant 0 : index
    %263 = vector.load %arg10[%262, %c0_71] : memref<128x128xf32, #tpu.memory_space<vmem>>, vector<16x128xf32>
    %264 = arith.truncf %235 : vector<16x32xf32> to vector<16x32xbf16>
    %cst_72 = arith.constant dense<0.000000e+00> : vector<16x128xf32>
    %265 = tpu.matmul %264, %8, %cst_72 {dimension_numbers = #tpu.dot_dimension_numbers<[1], [0], [0], [1], [0, 0, 1, 1], [], []>} : vector<16x32xbf16>, vector<32x128xbf16>, vector<16x128xf32> -> vector<16x128xf32>
    %266 = arith.addf %263, %265 : vector<16x128xf32>
    %267 = vector.extract_strided_slice %266 {offsets = [0, 0], sizes = [16, 96], strides = [1, 1]} : vector<16x128xf32> to vector<16x96xf32>
    %cst_73 = arith.constant 5.000000e-01 : f32
    %268 = vector.broadcast %cst_73 : f32 to vector<16x96xf32>
    %269 = arith.mulf %268, %267 : vector<16x96xf32>
    %270 = math.tanh %269 : vector<16x96xf32>
    %cst_74 = arith.constant 1.000000e+00 : f32
    %271 = vector.broadcast %cst_74 : f32 to vector<16x96xf32>
    %272 = arith.addf %271, %270 : vector<16x96xf32>
    %cst_75 = arith.constant 5.000000e-01 : f32
    %273 = vector.broadcast %cst_75 : f32 to vector<16x96xf32>
    %274 = arith.mulf %273, %272 : vector<16x96xf32>
    %275 = vector.extract_strided_slice %266 {offsets = [0, 96], sizes = [16, 32], strides = [1, 1]} : vector<16x128xf32> to vector<16x32xf32>
    %276 = math.tanh %275 : vector<16x32xf32>
    %277 = vector.extract_strided_slice %274 {offsets = [0, 0], sizes = [16, 32], strides = [1, 1]} : vector<16x96xf32> to vector<16x32xf32>
    %278 = vector.extract_strided_slice %274 {offsets = [0, 32], sizes = [16, 32], strides = [1, 1]} : vector<16x96xf32> to vector<16x32xf32>
    %279 = vector.extract_strided_slice %274 {offsets = [0, 64], sizes = [16, 32], strides = [1, 1]} : vector<16x96xf32> to vector<16x32xf32>
    %280 = arith.mulf %278, %233 : vector<16x32xf32>
    %281 = arith.mulf %277, %276 : vector<16x32xf32>
    %282 = arith.addf %280, %281 : vector<16x32xf32>
    %283 = math.tanh %282 : vector<16x32xf32>
    %284 = arith.mulf %279, %283 : vector<16x32xf32>
    %285 = arith.truncf %284 : vector<16x32xf32> to vector<16x32xbf16>
    %cst_76 = arith.constant dense<0.000000e+00> : vector<16x128xf32>
    %286 = tpu.matmul %285, %9, %cst_76 {dimension_numbers = #tpu.dot_dimension_numbers<[1], [0], [0], [1], [0, 0, 1, 1], [], []>} : vector<16x32xbf16>, vector<32x128xbf16>, vector<16x128xf32> -> vector<16x128xf32>
    %287 = arith.truncf %259 : vector<16x32xf32> to vector<16x32xbf16>
    %cst_77 = arith.constant dense<0.000000e+00> : vector<16x128xf32>
    %288 = tpu.matmul %287, %10, %cst_77 {dimension_numbers = #tpu.dot_dimension_numbers<[1], [0], [0], [1], [0, 0, 1, 1], [], []>} : vector<16x32xbf16>, vector<32x128xbf16>, vector<16x128xf32> -> vector<16x128xf32>
    %289 = arith.addf %286, %288 : vector<16x128xf32>
    %290 = arith.addf %289, %13 : vector<16x128xf32>
    %291 = vector.extract_strided_slice %290 {offsets = [0, 0], sizes = [16, 96], strides = [1, 1]} : vector<16x128xf32> to vector<16x96xf32>
    %cst_78 = arith.constant 5.000000e-01 : f32
    %292 = vector.broadcast %cst_78 : f32 to vector<16x96xf32>
    %293 = arith.mulf %292, %291 : vector<16x96xf32>
    %294 = math.tanh %293 : vector<16x96xf32>
    %cst_79 = arith.constant 1.000000e+00 : f32
    %295 = vector.broadcast %cst_79 : f32 to vector<16x96xf32>
    %296 = arith.addf %295, %294 : vector<16x96xf32>
    %cst_80 = arith.constant 5.000000e-01 : f32
    %297 = vector.broadcast %cst_80 : f32 to vector<16x96xf32>
    %298 = arith.mulf %297, %296 : vector<16x96xf32>
    %299 = vector.extract_strided_slice %290 {offsets = [0, 96], sizes = [16, 32], strides = [1, 1]} : vector<16x128xf32> to vector<16x32xf32>
    %300 = math.tanh %299 : vector<16x32xf32>
    %301 = vector.extract_strided_slice %298 {offsets = [0, 0], sizes = [16, 32], strides = [1, 1]} : vector<16x96xf32> to vector<16x32xf32>
    %302 = vector.extract_strided_slice %298 {offsets = [0, 32], sizes = [16, 32], strides = [1, 1]} : vector<16x96xf32> to vector<16x32xf32>
    %303 = vector.extract_strided_slice %298 {offsets = [0, 64], sizes = [16, 32], strides = [1, 1]} : vector<16x96xf32> to vector<16x32xf32>
    %304 = arith.mulf %302, %257 : vector<16x32xf32>
    %305 = arith.mulf %301, %300 : vector<16x32xf32>
    %306 = arith.addf %304, %305 : vector<16x32xf32>
    %307 = math.tanh %306 : vector<16x32xf32>
    %308 = arith.mulf %303, %307 : vector<16x32xf32>
    %c6_i32 = arith.constant 6 : i32
    %c16_i32_81 = arith.constant 16 : i32
    %309 = arith.muli %c6_i32, %c16_i32_81 : i32
    %310 = tpu.assume_multiple %309, 16 : i32
    %311 = arith.index_cast %310 : i32 to index
    %c0_82 = arith.constant 0 : index
    %312 = vector.load %arg10[%311, %c0_82] : memref<128x128xf32, #tpu.memory_space<vmem>>, vector<16x128xf32>
    %313 = arith.truncf %284 : vector<16x32xf32> to vector<16x32xbf16>
    %cst_83 = arith.constant dense<0.000000e+00> : vector<16x128xf32>
    %314 = tpu.matmul %313, %8, %cst_83 {dimension_numbers = #tpu.dot_dimension_numbers<[1], [0], [0], [1], [0, 0, 1, 1], [], []>} : vector<16x32xbf16>, vector<32x128xbf16>, vector<16x128xf32> -> vector<16x128xf32>
    %315 = arith.addf %312, %314 : vector<16x128xf32>
    %316 = vector.extract_strided_slice %315 {offsets = [0, 0], sizes = [16, 96], strides = [1, 1]} : vector<16x128xf32> to vector<16x96xf32>
    %cst_84 = arith.constant 5.000000e-01 : f32
    %317 = vector.broadcast %cst_84 : f32 to vector<16x96xf32>
    %318 = arith.mulf %317, %316 : vector<16x96xf32>
    %319 = math.tanh %318 : vector<16x96xf32>
    %cst_85 = arith.constant 1.000000e+00 : f32
    %320 = vector.broadcast %cst_85 : f32 to vector<16x96xf32>
    %321 = arith.addf %320, %319 : vector<16x96xf32>
    %cst_86 = arith.constant 5.000000e-01 : f32
    %322 = vector.broadcast %cst_86 : f32 to vector<16x96xf32>
    %323 = arith.mulf %322, %321 : vector<16x96xf32>
    %324 = vector.extract_strided_slice %315 {offsets = [0, 96], sizes = [16, 32], strides = [1, 1]} : vector<16x128xf32> to vector<16x32xf32>
    %325 = math.tanh %324 : vector<16x32xf32>
    %326 = vector.extract_strided_slice %323 {offsets = [0, 0], sizes = [16, 32], strides = [1, 1]} : vector<16x96xf32> to vector<16x32xf32>
    %327 = vector.extract_strided_slice %323 {offsets = [0, 32], sizes = [16, 32], strides = [1, 1]} : vector<16x96xf32> to vector<16x32xf32>
    %328 = vector.extract_strided_slice %323 {offsets = [0, 64], sizes = [16, 32], strides = [1, 1]} : vector<16x96xf32> to vector<16x32xf32>
    %329 = arith.mulf %327, %282 : vector<16x32xf32>
    %330 = arith.mulf %326, %325 : vector<16x32xf32>
    %331 = arith.addf %329, %330 : vector<16x32xf32>
    %332 = math.tanh %331 : vector<16x32xf32>
    %333 = arith.mulf %328, %332 : vector<16x32xf32>
    %334 = arith.truncf %333 : vector<16x32xf32> to vector<16x32xbf16>
    %cst_87 = arith.constant dense<0.000000e+00> : vector<16x128xf32>
    %335 = tpu.matmul %334, %9, %cst_87 {dimension_numbers = #tpu.dot_dimension_numbers<[1], [0], [0], [1], [0, 0, 1, 1], [], []>} : vector<16x32xbf16>, vector<32x128xbf16>, vector<16x128xf32> -> vector<16x128xf32>
    %336 = arith.truncf %308 : vector<16x32xf32> to vector<16x32xbf16>
    %cst_88 = arith.constant dense<0.000000e+00> : vector<16x128xf32>
    %337 = tpu.matmul %336, %10, %cst_88 {dimension_numbers = #tpu.dot_dimension_numbers<[1], [0], [0], [1], [0, 0, 1, 1], [], []>} : vector<16x32xbf16>, vector<32x128xbf16>, vector<16x128xf32> -> vector<16x128xf32>
    %338 = arith.addf %335, %337 : vector<16x128xf32>
    %339 = arith.addf %338, %13 : vector<16x128xf32>
    %340 = vector.extract_strided_slice %339 {offsets = [0, 0], sizes = [16, 96], strides = [1, 1]} : vector<16x128xf32> to vector<16x96xf32>
    %cst_89 = arith.constant 5.000000e-01 : f32
    %341 = vector.broadcast %cst_89 : f32 to vector<16x96xf32>
    %342 = arith.mulf %341, %340 : vector<16x96xf32>
    %343 = math.tanh %342 : vector<16x96xf32>
    %cst_90 = arith.constant 1.000000e+00 : f32
    %344 = vector.broadcast %cst_90 : f32 to vector<16x96xf32>
    %345 = arith.addf %344, %343 : vector<16x96xf32>
    %cst_91 = arith.constant 5.000000e-01 : f32
    %346 = vector.broadcast %cst_91 : f32 to vector<16x96xf32>
    %347 = arith.mulf %346, %345 : vector<16x96xf32>
    %348 = vector.extract_strided_slice %339 {offsets = [0, 96], sizes = [16, 32], strides = [1, 1]} : vector<16x128xf32> to vector<16x32xf32>
    %349 = math.tanh %348 : vector<16x32xf32>
    %350 = vector.extract_strided_slice %347 {offsets = [0, 0], sizes = [16, 32], strides = [1, 1]} : vector<16x96xf32> to vector<16x32xf32>
    %351 = vector.extract_strided_slice %347 {offsets = [0, 32], sizes = [16, 32], strides = [1, 1]} : vector<16x96xf32> to vector<16x32xf32>
    %352 = vector.extract_strided_slice %347 {offsets = [0, 64], sizes = [16, 32], strides = [1, 1]} : vector<16x96xf32> to vector<16x32xf32>
    %353 = arith.mulf %351, %306 : vector<16x32xf32>
    %354 = arith.mulf %350, %349 : vector<16x32xf32>
    %355 = arith.addf %353, %354 : vector<16x32xf32>
    %356 = math.tanh %355 : vector<16x32xf32>
    %357 = arith.mulf %352, %356 : vector<16x32xf32>
    %c7_i32 = arith.constant 7 : i32
    %c16_i32_92 = arith.constant 16 : i32
    %358 = arith.muli %c7_i32, %c16_i32_92 : i32
    %359 = tpu.assume_multiple %358, 16 : i32
    %360 = arith.index_cast %359 : i32 to index
    %c0_93 = arith.constant 0 : index
    %361 = vector.load %arg10[%360, %c0_93] : memref<128x128xf32, #tpu.memory_space<vmem>>, vector<16x128xf32>
    %362 = arith.truncf %333 : vector<16x32xf32> to vector<16x32xbf16>
    %cst_94 = arith.constant dense<0.000000e+00> : vector<16x128xf32>
    %363 = tpu.matmul %362, %8, %cst_94 {dimension_numbers = #tpu.dot_dimension_numbers<[1], [0], [0], [1], [0, 0, 1, 1], [], []>} : vector<16x32xbf16>, vector<32x128xbf16>, vector<16x128xf32> -> vector<16x128xf32>
    %364 = arith.addf %361, %363 : vector<16x128xf32>
    %365 = vector.extract_strided_slice %364 {offsets = [0, 0], sizes = [16, 96], strides = [1, 1]} : vector<16x128xf32> to vector<16x96xf32>
    %cst_95 = arith.constant 5.000000e-01 : f32
    %366 = vector.broadcast %cst_95 : f32 to vector<16x96xf32>
    %367 = arith.mulf %366, %365 : vector<16x96xf32>
    %368 = math.tanh %367 : vector<16x96xf32>
    %cst_96 = arith.constant 1.000000e+00 : f32
    %369 = vector.broadcast %cst_96 : f32 to vector<16x96xf32>
    %370 = arith.addf %369, %368 : vector<16x96xf32>
    %cst_97 = arith.constant 5.000000e-01 : f32
    %371 = vector.broadcast %cst_97 : f32 to vector<16x96xf32>
    %372 = arith.mulf %371, %370 : vector<16x96xf32>
    %373 = vector.extract_strided_slice %364 {offsets = [0, 96], sizes = [16, 32], strides = [1, 1]} : vector<16x128xf32> to vector<16x32xf32>
    %374 = math.tanh %373 : vector<16x32xf32>
    %375 = vector.extract_strided_slice %372 {offsets = [0, 0], sizes = [16, 32], strides = [1, 1]} : vector<16x96xf32> to vector<16x32xf32>
    %376 = vector.extract_strided_slice %372 {offsets = [0, 32], sizes = [16, 32], strides = [1, 1]} : vector<16x96xf32> to vector<16x32xf32>
    %377 = vector.extract_strided_slice %372 {offsets = [0, 64], sizes = [16, 32], strides = [1, 1]} : vector<16x96xf32> to vector<16x32xf32>
    %378 = arith.mulf %376, %331 : vector<16x32xf32>
    %379 = arith.mulf %375, %374 : vector<16x32xf32>
    %380 = arith.addf %378, %379 : vector<16x32xf32>
    %381 = math.tanh %380 : vector<16x32xf32>
    %382 = arith.mulf %377, %381 : vector<16x32xf32>
    %383 = arith.truncf %382 : vector<16x32xf32> to vector<16x32xbf16>
    %cst_98 = arith.constant dense<0.000000e+00> : vector<16x128xf32>
    %384 = tpu.matmul %383, %9, %cst_98 {dimension_numbers = #tpu.dot_dimension_numbers<[1], [0], [0], [1], [0, 0, 1, 1], [], []>} : vector<16x32xbf16>, vector<32x128xbf16>, vector<16x128xf32> -> vector<16x128xf32>
    %385 = arith.truncf %357 : vector<16x32xf32> to vector<16x32xbf16>
    %cst_99 = arith.constant dense<0.000000e+00> : vector<16x128xf32>
    %386 = tpu.matmul %385, %10, %cst_99 {dimension_numbers = #tpu.dot_dimension_numbers<[1], [0], [0], [1], [0, 0, 1, 1], [], []>} : vector<16x32xbf16>, vector<32x128xbf16>, vector<16x128xf32> -> vector<16x128xf32>
    %387 = arith.addf %384, %386 : vector<16x128xf32>
    %388 = arith.addf %387, %13 : vector<16x128xf32>
    %389 = vector.extract_strided_slice %388 {offsets = [0, 0], sizes = [16, 96], strides = [1, 1]} : vector<16x128xf32> to vector<16x96xf32>
    %cst_100 = arith.constant 5.000000e-01 : f32
    %390 = vector.broadcast %cst_100 : f32 to vector<16x96xf32>
    %391 = arith.mulf %390, %389 : vector<16x96xf32>
    %392 = math.tanh %391 : vector<16x96xf32>
    %cst_101 = arith.constant 1.000000e+00 : f32
    %393 = vector.broadcast %cst_101 : f32 to vector<16x96xf32>
    %394 = arith.addf %393, %392 : vector<16x96xf32>
    %cst_102 = arith.constant 5.000000e-01 : f32
    %395 = vector.broadcast %cst_102 : f32 to vector<16x96xf32>
    %396 = arith.mulf %395, %394 : vector<16x96xf32>
    %397 = vector.extract_strided_slice %388 {offsets = [0, 96], sizes = [16, 32], strides = [1, 1]} : vector<16x128xf32> to vector<16x32xf32>
    %398 = math.tanh %397 : vector<16x32xf32>
    %399 = vector.extract_strided_slice %396 {offsets = [0, 0], sizes = [16, 32], strides = [1, 1]} : vector<16x96xf32> to vector<16x32xf32>
    %400 = vector.extract_strided_slice %396 {offsets = [0, 32], sizes = [16, 32], strides = [1, 1]} : vector<16x96xf32> to vector<16x32xf32>
    %401 = vector.extract_strided_slice %396 {offsets = [0, 64], sizes = [16, 32], strides = [1, 1]} : vector<16x96xf32> to vector<16x32xf32>
    %402 = arith.mulf %400, %355 : vector<16x32xf32>
    %403 = arith.mulf %399, %398 : vector<16x32xf32>
    %404 = arith.addf %402, %403 : vector<16x32xf32>
    %405 = math.tanh %404 : vector<16x32xf32>
    %406 = arith.mulf %401, %405 : vector<16x32xf32>
    %c8_i32 = arith.constant 8 : i32
    %407 = arith.truncf %406 : vector<16x32xf32> to vector<16x32xbf16>
    %c0_103 = arith.constant 0 : index
    %c0_104 = arith.constant 0 : index
    %408 = vector.load %arg7[%c0_103, %c0_104] : memref<32x128xbf16, #tpu.memory_space<vmem>>, vector<32x128xbf16>
    %cst_105 = arith.constant dense<0.000000e+00> : vector<16x128xf32>
    %409 = tpu.matmul %407, %408, %cst_105 {dimension_numbers = #tpu.dot_dimension_numbers<[1], [0], [0], [1], [0, 0, 1, 1], [], []>} : vector<16x32xbf16>, vector<32x128xbf16>, vector<16x128xf32> -> vector<16x128xf32>
    %c0_106 = arith.constant 0 : index
    %c0_107 = arith.constant 0 : index
    %410 = vector.load %arg8[%c0_106, %c0_107] : memref<1x128xf32, #tpu.memory_space<vmem>>, vector<1x128xf32>
    %411 = vector.broadcast %410 : vector<1x128xf32> to vector<16x128xf32>
    %412 = arith.addf %409, %411 : vector<16x128xf32>
    %cst_108 = arith.constant 0.000000e+00 : f32
    %413 = vector.broadcast %cst_108 : f32 to vector<16x128xf32>
    %414 = arith.cmpf oge, %412, %413 : vector<16x128xf32>
    %cst_109 = arith.constant 0.00999999977 : f32
    %415 = vector.broadcast %cst_109 : f32 to vector<16x128xf32>
    %416 = arith.mulf %415, %412 : vector<16x128xf32>
    %417 = arith.select %414, %412, %416 : vector<16x128xi1>, vector<16x128xf32>
    %418 = vector.extract_strided_slice %417 {offsets = [0, 8], sizes = [16, 1], strides = [1, 1]} : vector<16x128xf32> to vector<16x1xf32>
    %419 = tpu.iota {dimensions = array<i32: 1>} : vector<16x128xi32>
    %420 = tpu.iota {dimensions = array<i32: 0>} : vector<16x128xi32>
    %c8_i32_110 = arith.constant 8 : i32
    %421 = vector.broadcast %c8_i32_110 : i32 to vector<16x128xi32>
    %422 = arith.cmpi slt, %419, %421 : vector<16x128xi32>
    %c4_i32_111 = arith.constant 4 : i32
    %423 = vector.broadcast %c4_i32_111 : i32 to vector<16x128xi32>
    %424 = arith.cmpi slt, %420, %423 : vector<16x128xi32>
    %425 = arith.andi %422, %424 : vector<16x128xi1>
    %cst_112 = arith.constant 0.000000e+00 : f32
    %426 = vector.broadcast %cst_112 : f32 to vector<16x128xf32>
    %427 = arith.select %425, %417, %426 : vector<16x128xi1>, vector<16x128xf32>
    %428 = vector.shape_cast %427 : vector<16x128xf32> to vector<1x16x128xf32>
    %cst_113 = arith.constant dense<0.000000e+00> : vector<1xf32>
    %429 = vector.multi_reduction <add>, %428, %cst_113 [1, 2] : vector<1x16x128xf32> to vector<1xf32>
    %430 = vector.shape_cast %429 : vector<1xf32> to vector<1x1x1xf32>
    %431 = vector.extract %430[0, 0, 0] : f32 from vector<1x1x1xf32>
    %432 = vector.broadcast %418 : vector<16x1xf32> to vector<16x128xf32>
    %433 = arith.addf %432, %417 : vector<16x128xf32>
    %cst_114 = arith.constant 8.000000e+00 : f32
    %434 = arith.divf %431, %cst_114 : f32
    %435 = vector.broadcast %434 : f32 to vector<16x128xf32>
    %436 = arith.addf %433, %435 : vector<16x128xf32>
    %c0_115 = arith.constant 0 : index
    %c0_116 = arith.constant 0 : index
    %437 = vector.load %arg9[%c0_115, %c0_116] : memref<16x128xf32, #tpu.memory_space<vmem>>, vector<16x128xf32>
    tpu.vector_store %arg9[%c0_115, %c0_116], %436 {strides = array<i32>} : memref<16x128xf32, #tpu.memory_space<vmem>>, vector<16x128xf32>,
    return
  }
}

</mosaic_0001>

<llo_original>
// kernel: tpu_custom_call.1
$region0: #{tpu_custom_call.1}
  #allocation0 [shape = 'u32[]', space=smem, size = 0x4, offset = 0x4, fixed_abs, tag = 'smem constant byte address 0x4 - core index']
  #allocation1 [shape = 'u32[144,128]{1,0:T(1,128)}', space=vmem, size = 0x12000, scoped, tag = 'internal scratch']
  #allocation2 [shape = 'f32[128,128]{1,0:T(8,128)}', space=vmem, size = 0x10000, scoped, tag = 'scratch operand']
  %s0 = inlined_call_operand.vmem [shape: f32[128,16], index: 0, kind: input, shape index: {}]
  %s1 = inlined_call_operand.vmem [shape: bf16[16,128], index: 1, kind: input, shape index: {}]
  %s2 = inlined_call_operand.vmem [shape: bf16[32,128], index: 2, kind: input, shape index: {}]
  %s3 = inlined_call_operand.vmem [shape: f32[1,128], index: 3, kind: input, shape index: {}]
  %s4 = inlined_call_operand.vmem [shape: bf16[32,128], index: 4, kind: input, shape index: {}]
  %s5 = inlined_call_operand.vmem [shape: bf16[32,128], index: 5, kind: input, shape index: {}]
  %s6 = inlined_call_operand.vmem [shape: f32[1,128], index: 6, kind: input, shape index: {}]
  %s7 = inlined_call_operand.vmem [shape: bf16[32,128], index: 7, kind: input, shape index: {}]
  %s8 = inlined_call_operand.vmem [shape: f32[1,128], index: 8, kind: input, shape index: {}]
  %s9 = inlined_call_operand.hbm [shape: f32[16,128], index: 9, kind: output, shape index: {}]
  %s10 = sld [smem:[#allocation0]]
  $region46: #{tpu_custom_call.1} parent=0
    _
  %s12 = ssub.s32 1, %s10
  %s13 = scalar_select 0, %s12, %s10
  $region1: #{tpu_custom_call.1} parent=0
    #allocation3 [shape = 'u8[8192]{0}', space=vmem, size = 0x2000, scoped, tag = 'output window, operand 0, single buffered']
    #allocation4 [shape = 's32[1]{0}', space=sflag, size = 0x4, scoped, tag = 'scoped memory for tpu_custom_call.1']
    %14 = vsyncpa [#allocation4], 0
    // Predicated region
    $region2: #{tpu_custom_call.1} parent=1 // pred_check
      _
    $region3: #{tpu_custom_call.1} parent=1 // pred_check_branch
      %16 = sbr.rel (0) target = $region5
    $region4: #{tpu_custom_call.1} parent=1 // pred_region
      _
    $region5: #{tpu_custom_call.1} parent=1 // pred_fallthru
      _
    // Predicated region
    $region6: #{tpu_custom_call.1} parent=1 // pred_check
      _
    $region7: #{tpu_custom_call.1} parent=1 // pred_check_branch
      %18 = sbr.rel (0) target = $region9
    $region8: #{tpu_custom_call.1} parent=1 // pred_region
      _
    $region9: #{tpu_custom_call.1} parent=1 // pred_fallthru
      _
    // Predicated region
    $region10: #{tpu_custom_call.1} parent=1 // pred_check
      _
    $region11: #{tpu_custom_call.1} parent=1 // pred_check_branch
      %20 = sbr.rel (0) target = $region13
    $region12: #{tpu_custom_call.1} parent=1 // pred_region
      _
    $region13: #{tpu_custom_call.1} parent=1 // pred_fallthru
      _
    // Predicated region
    $region14: #{tpu_custom_call.1} parent=1 // pred_check
      _
    $region15: #{tpu_custom_call.1} parent=1 // pred_check_branch
      %22 = sbr.rel (0) target = $region17
    $region16: #{tpu_custom_call.1} parent=1 // pred_region
      _
    $region17: #{tpu_custom_call.1} parent=1 // pred_fallthru
      _
    // Predicated region
    $region18: #{tpu_custom_call.1} parent=1 // pred_check
      _
    $region19: #{tpu_custom_call.1} parent=1 // pred_check_branch
      %24 = sbr.rel (0) target = $region21
    $region20: #{tpu_custom_call.1} parent=1 // pred_region
      _
    $region21: #{tpu_custom_call.1} parent=1 // pred_fallthru
      _
    // Predicated region
    $region22: #{tpu_custom_call.1} parent=1 // pred_check
      _
    $region23: #{tpu_custom_call.1} parent=1 // pred_check_branch
      %26 = sbr.rel (0) target = $region25
    $region24: #{tpu_custom_call.1} parent=1 // pred_region
      _
    $region25: #{tpu_custom_call.1} parent=1 // pred_fallthru
      _
    // Predicated region
    $region26: #{tpu_custom_call.1} parent=1 // pred_check
      _
    $region27: #{tpu_custom_call.1} parent=1 // pred_check_branch
      %28 = sbr.rel (0) target = $region29
    $region28: #{tpu_custom_call.1} parent=1 // pred_region
      _
    $region29: #{tpu_custom_call.1} parent=1 // pred_fallthru
      _
    // Predicated region
    $region30: #{tpu_custom_call.1} parent=1 // pred_check
      _
    $region31: #{tpu_custom_call.1} parent=1 // pred_check_branch
      %30 = sbr.rel (0) target = $region33
    $region32: #{tpu_custom_call.1} parent=1 // pred_region
      _
    $region33: #{tpu_custom_call.1} parent=1 // pred_fallthru
      _
    // Predicated region
    $region34: #{tpu_custom_call.1} parent=1 // pred_check
      _
    $region35: #{tpu_custom_call.1} parent=1 // pred_check_branch
      %32 = sbr.rel (0) target = $region37
    $region36: #{tpu_custom_call.1} parent=1 // pred_region
      _
    $region37: #{tpu_custom_call.1} parent=1 // pred_fallthru
      _
    %v34 = vld [vmem:[%s0] sm:$0xff]
    %v35 = vld [vmem:[%s0 + $0x8] sm:$0xff]
    %v36 = vld [vmem:[%s0 + $0x10] sm:$0xff]
    %v37 = vld [vmem:[%s0 + $0x18] sm:$0xff]
    %v38 = vld [vmem:[%s0 + $0x20] sm:$0xff]
    %v39 = vld [vmem:[%s0 + $0x28] sm:$0xff]
    %v40 = vld [vmem:[%s0 + $0x30] sm:$0xff]
    %v41 = vld [vmem:[%s0 + $0x38] sm:$0xff]
    %v42 = vld [vmem:[%s0 + $0x40] sm:$0xff]
    %v43 = vld [vmem:[%s0 + $0x48] sm:$0xff]
    %v44 = vld [vmem:[%s0 + $0x50] sm:$0xff]
    %v45 = vld [vmem:[%s0 + $0x58] sm:$0xff]
    %v46 = vld [vmem:[%s0 + $0x60] sm:$0xff]
    %v47 = vld [vmem:[%s0 + $0x68] sm:$0xff]
    %v48 = vld [vmem:[%s0 + $0x70] sm:$0xff]
    %v49 = vld [vmem:[%s0 + $0x78] sm:$0xff]
    %v50 = vpack.c.bf16 %v35, %v34
    %v51 = vpack.c.bf16 %v37, %v36
    %v52 = vpack.c.bf16 %v39, %v38
    %v53 = vpack.c.bf16 %v41, %v40
    %v54 = vpack.c.bf16 %v43, %v42
    %v55 = vpack.c.bf16 %v45, %v44
    %v56 = vpack.c.bf16 %v47, %v46
    %v57 = vpack.c.bf16 %v49, %v48
    %v58 = vld [vmem:[%s1] sm:$0xf]
    %v59 = vld [vmem:[%s1 + $0x4] sm:$0xf]
    %v60 = vld [vmem:[%s3] sm:$0x1]
    %v62 = vlaneseq
    %v63 = vshrl.u32 %v62, 7
    %v64 = vsub.s32 0, %v63
    %v65 = vrot.slane %v60, %v64
    %v69 = vunpack.c.l.b16 %v58
    %v70 = vunpack.c.l.b16 %v59
    %v71 = vpack.c.b16 %v70, %v69
    %vm73 = vcmask 130048
    %v75 = vsel %vm73, %v50, 0
    %v78 = vsel %vm73, %v51, 0
    %v81 = vsel %vm73, %v52, 0
    %v84 = vsel %vm73, %v53, 0
    %v87 = vsel %vm73, %v54, 0
    %v90 = vsel %vm73, %v55, 0
    %v93 = vsel %vm73, %v56, 0
    %v96 = vsel %vm73, %v57, 0
    %98 = vmatprep.subr.bf16.mxu0 0
    %99 = vmatpush1.bf16.msra.mxu0 %v71
    %100 = vmatprep.subr.bf16.mxu0 0
    %101 = vmatpush1.bf16.msra.mxu0 0
    %102 = vmatprep.subr.bf16.mxu0 0
    %103 = vmatpush1.bf16.msra.mxu0 0
    %104 = vmatprep.subr.bf16.mxu0 0
    %105 = vmatpush1.bf16.msra.mxu0 0
    %106 = vmatprep.subr.bf16.mxu0 0
    %107 = vmatpush1.bf16.msra.mxu0 0
    %108 = vmatprep.subr.bf16.mxu0 0
    %109 = vmatpush1.bf16.msra.mxu0 0
    %110 = vmatprep.subr.bf16.mxu0 0
    %111 = vmatpush1.bf16.msra.mxu0 0
    %112 = vmatprep.subr.bf16.mxu0 0
    %113 = vmatpush1.bf16.msra.mxu0 0
    %114 = vmatprep.subr.bf16.mxu0 0
    %115 = vmatpush1.bf16.msra.mxu0 0
    %116 = vmatprep.subr.bf16.mxu0 0
    %117 = vmatpush1.bf16.msra.mxu0 0
    %118 = vmatprep.subr.bf16.mxu0 0
    %119 = vmatpush1.bf16.msra.mxu0 0
    %120 = vmatprep.subr.bf16.mxu0 0
    %121 = vmatpush1.bf16.msra.mxu0 0
    %122 = vmatprep.subr.bf16.mxu0 0
    %123 = vmatpush1.bf16.msra.mxu0 0
    %124 = vmatprep.subr.bf16.mxu0 0
    %125 = vmatpush1.bf16.msra.mxu0 0
    %126 = vmatprep.subr.bf16.mxu0 0
    %127 = vmatpush1.bf16.msra.mxu0 0
    %128 = vmatprep.subr.bf16.mxu0 0
    %129 = vmatpush1.bf16.msra.mxu0 0
    %130 = vmatprep.mubr.bf16.mxu0 0
    %131 = vmatmul.mubr.bf16.gmra.mrb[0].mxu0 %v75
    %v132 = vpop.f32.mrb[0].mxu0
    %v133 = vadd.f32 %v65, %v132
    %v134 = vpop.f32.mrb[0].mxu0
    %v135 = vpop.f32.mrb[0].mxu0
    %v136 = vadd.f32 %v65, %v135
    %v137 = vpop.f32.mrb[0].mxu0
    %138 = vmatprep.mubr.bf16.mxu0 0
    %139 = vmatmul.mubr.bf16.gmra.mrb[0].mxu0 %v78
    %v140 = vpop.f32.mrb[0].mxu0
    %v141 = vadd.f32 %v65, %v140
    %v142 = vpop.f32.mrb[0].mxu0
    %v143 = vpop.f32.mrb[0].mxu0
    %v144 = vadd.f32 %v65, %v143
    %v145 = vpop.f32.mrb[0].mxu0
    %146 = vmatprep.mubr.bf16.mxu0 0
    %147 = vmatmul.mubr.bf16.gmra.mrb[0].mxu0 %v81
    %v148 = vpop.f32.mrb[0].mxu0
    %v149 = vadd.f32 %v65, %v148
    %v150 = vpop.f32.mrb[0].mxu0
    %v151 = vpop.f32.mrb[0].mxu0
    %v152 = vadd.f32 %v65, %v151
    %v153 = vpop.f32.mrb[0].mxu0
    %154 = vmatprep.mubr.bf16.mxu0 0
    %155 = vmatmul.mubr.bf16.gmra.mrb[0].mxu0 %v84
    %v156 = vpop.f32.mrb[0].mxu0
    %v157 = vadd.f32 %v65, %v156
    %v158 = vpop.f32.mrb[0].mxu0
    %v159 = vpop.f32.mrb[0].mxu0
    %v160 = vadd.f32 %v65, %v159
    %v161 = vpop.f32.mrb[0].mxu0
    %162 = vmatprep.mubr.bf16.mxu0 0
    %163 = vmatmul.mubr.bf16.gmra.mrb[0].mxu0 %v87
    %v164 = vpop.f32.mrb[0].mxu0
    %v165 = vadd.f32 %v65, %v164
    %v166 = vpop.f32.mrb[0].mxu0
    %v167 = vpop.f32.mrb[0].mxu0
    %v168 = vadd.f32 %v65, %v167
    %v169 = vpop.f32.mrb[0].mxu0
    %170 = vmatprep.mubr.bf16.mxu0 0
    %171 = vmatmul.mubr.bf16.gmra.mrb[0].mxu0 %v90
    %v172 = vpop.f32.mrb[0].mxu0
    %v173 = vadd.f32 %v65, %v172
    %v174 = vpop.f32.mrb[0].mxu0
    %v175 = vpop.f32.mrb[0].mxu0
    %v176 = vadd.f32 %v65, %v175
    %v177 = vpop.f32.mrb[0].mxu0
    %178 = vmatprep.mubr.bf16.mxu0 0
    %179 = vmatmul.mubr.bf16.gmra.mrb[0].mxu0 %v93
    %v180 = vpop.f32.mrb[0].mxu0
    %v181 = vadd.f32 %v65, %v180
    %v182 = vpop.f32.mrb[0].mxu0
    %v183 = vpop.f32.mrb[0].mxu0
    %v184 = vadd.f32 %v65, %v183
    %v185 = vpop.f32.mrb[0].mxu0
    %186 = vmatprep.mubr.bf16.mxu0 0
    %187 = vmatmul.mubr.bf16.gmra.mrb[0].mxu0 %v96
    %v188 = vpop.f32.mrb[0].mxu0
    %v189 = vadd.f32 %v65, %v188
    %v190 = vpop.f32.mrb[0].mxu0
    %v191 = vpop.f32.mrb[0].mxu0
    %v192 = vadd.f32 %v65, %v191
    %v193 = vpop.f32.mrb[0].mxu0
    %194 = vdwg.mxu0
    %195 = vst [vmem:[#allocation2] sm:$0xff] %v133
    %196 = vst [vmem:[#allocation2 + $0x8] sm:$0xff] %v136
    %197 = vst [vmem:[#allocation2 + $0x10] sm:$0xff] %v141
    %198 = vst [vmem:[#allocation2 + $0x18] sm:$0xff] %v144
    %199 = vst [vmem:[#allocation2 + $0x20] sm:$0xff] %v149
    %200 = vst [vmem:[#allocation2 + $0x28] sm:$0xff] %v152
    %201 = vst [vmem:[#allocation2 + $0x30] sm:$0xff] %v157
    %202 = vst [vmem:[#allocation2 + $0x38] sm:$0xff] %v160
    %203 = vst [vmem:[#allocation2 + $0x40] sm:$0xff] %v165
    %204 = vst [vmem:[#allocation2 + $0x48] sm:$0xff] %v168
    %205 = vst [vmem:[#allocation2 + $0x50] sm:$0xff] %v173
    %206 = vst [vmem:[#allocation2 + $0x58] sm:$0xff] %v176
    %207 = vst [vmem:[#allocation2 + $0x60] sm:$0xff] %v181
    %208 = vst [vmem:[#allocation2 + $0x68] sm:$0xff] %v184
    %209 = vst [vmem:[#allocation2 + $0x70] sm:$0xff] %v189
    %210 = vst [vmem:[#allocation2 + $0x78] sm:$0xff] %v192
    %v211 = vld [vmem:[%s2] sm:$0xf]
    %v212 = vld [vmem:[%s2 + $0x4] sm:$0xf]
    %v213 = vld [vmem:[%s2 + $0x8] sm:$0xf]
    %v214 = vld [vmem:[%s2 + $0xc] sm:$0xf]
    %v215 = vld [vmem:[%s4] sm:$0xf]
    %v216 = vld [vmem:[%s4 + $0x4] sm:$0xf]
    %v217 = vld [vmem:[%s4 + $0x8] sm:$0xf]
    %v218 = vld [vmem:[%s4 + $0xc] sm:$0xf]
    %v219 = vld [vmem:[%s5] sm:$0xf]
    %v220 = vld [vmem:[%s5 + $0x4] sm:$0xf]
    %v221 = vld [vmem:[%s5 + $0x8] sm:$0xf]
    %v222 = vld [vmem:[%s5 + $0xc] sm:$0xf]
    %v223 = vld [vmem:[%s6] sm:$0x1]
    %v225 = vlaneseq
    %v226 = vshrl.u32 %v225, 7
    %v227 = vsub.s32 0, %v226
    %v228 = vrot.slane %v223, %v227
    %v230 = vld [vmem:[#allocation2] sm:$0xff]
    %v231 = vld [vmem:[#allocation2 + $0x8] sm:$0xff]
    %v236 = vunpack.c.l.b16 %v211
    %v237 = vunpack.c.l.b16 %v212
    %v238 = vunpack.c.l.b16 %v213
    %v239 = vunpack.c.l.b16 %v214
    %v240 = vpack.c.b16 %v237, %v236
    %v241 = vpack.c.b16 %v239, %v238
    %vm244 = vcmask 261120
    %v246 = vsel %vm244, 0, 0
    %248 = vmatprep.subr.bf16.mxu0 0
    %249 = vmatpush1.bf16.msra.mxu0 %v240
    %250 = vmatprep.subr.bf16.mxu0 0
    %251 = vmatpush1.bf16.msra.mxu0 %v241
    %252 = vmatprep.subr.bf16.mxu0 0
    %253 = vmatpush1.bf16.msra.mxu0 0
    %254 = vmatprep.subr.bf16.mxu0 0
    %255 = vmatpush1.bf16.msra.mxu0 0
    %256 = vmatprep.subr.bf16.mxu0 0
    %257 = vmatpush1.bf16.msra.mxu0 0
    %258 = vmatprep.subr.bf16.mxu0 0
    %259 = vmatpush1.bf16.msra.mxu0 0
    %260 = vmatprep.subr.bf16.mxu0 0
    %261 = vmatpush1.bf16.msra.mxu0 0
    %262 = vmatprep.subr.bf16.mxu0 0
    %263 = vmatpush1.bf16.msra.mxu0 0
    %264 = vmatprep.subr.bf16.mxu0 0
    %265 = vmatpush1.bf16.msra.mxu0 0
    %266 = vmatprep.subr.bf16.mxu0 0
    %267 = vmatpush1.bf16.msra.mxu0 0
    %268 = vmatprep.subr.bf16.mxu0 0
    %269 = vmatpush1.bf16.msra.mxu0 0
    %270 = vmatprep.subr.bf16.mxu0 0
    %271 = vmatpush1.bf16.msra.mxu0 0
    %272 = vmatprep.subr.bf16.mxu0 0
    %273 = vmatpush1.bf16.msra.mxu0 0
    %274 = vmatprep.subr.bf16.mxu0 0
    %275 = vmatpush1.bf16.msra.mxu0 0
    %276 = vmatprep.subr.bf16.mxu0 0
    %277 = vmatpush1.bf16.msra.mxu0 0
    %278 = vmatprep.subr.bf16.mxu0 0
    %279 = vmatpush1.bf16.msra.mxu0 0
    %280 = vmatprep.mubr.bf16.mxu0 0
    %281 = vmatmul.mubr.bf16.gmra.mrb[0].mxu0 %v246
    %v282 = vpop.f32.mrb[0].mxu0
    %v283 = vadd.f32 0.0, %v282
    %v284 = vpop.f32.mrb[0].mxu0
    %v285 = vpop.f32.mrb[0].mxu0
    %v286 = vadd.f32 0.0, %v285
    %v287 = vpop.f32.mrb[0].mxu0
    %288 = vdwg.mxu0
    %v289 = vadd.f32 %v230, %v283
    %v290 = vadd.f32 %v231, %v286
    %v291 = vmul.f32 %v289, 0.5
    %v292 = vmul.f32 %v290, 0.5
    %v293 = vtanh.pop %v291
    %v294 = vtanh.pop %v292
    %v295 = vadd.f32 %v293, 1.0
    %v296 = vadd.f32 %v294, 1.0
    %v297 = vmul.f32 %v295, 0.5
    %v298 = vmul.f32 %v296, 0.5
    %v299 = vtanh.pop %v289
    %v300 = vtanh.pop %v290
    %v301 = vmul.f32 %v297, 0.0
    %v302 = vmul.f32 %v298, 0.0
    %305 = vrot.lane.b32.xlu0 %v299, 32
    %v306 = vpop.permute.xlu0 %305
    %307 = vrot.lane.b32.xlu0 %v300, 32
    %v308 = vpop.permute.xlu0 %307
    %v311 = vmul.f32 %v297, %v306
    %v312 = vmul.f32 %v298, %v308
    %315 = vrot.lane.b32.xlu0 %v311, 32
    %v316 = vpop.permute.xlu0 %315
    %317 = vrot.lane.b32.xlu0 %v312, 32
    %v318 = vpop.permute.xlu0 %317
    %v321 = vadd.f32 %v301, %v316
    %v322 = vadd.f32 %v302, %v318
    %v323 = vtanh.pop %v321
    %v324 = vtanh.pop %v322
    %327 = vrot.lane.b32.xlu0 %v323, 32
    %v328 = vpop.permute.xlu0 %327
    %329 = vrot.lane.b32.xlu0 %v324, 32
    %v330 = vpop.permute.xlu0 %329
    %v333 = vmul.f32 %v297, %v328
    %v334 = vmul.f32 %v298, %v330
    %v335 = vpack.c.bf16 %v334, %v333
    %v340 = vunpack.c.l.b16 %v219
    %v341 = vunpack.c.l.b16 %v220
    %v342 = vunpack.c.l.b16 %v221
    %v343 = vunpack.c.l.b16 %v222
    %v344 = vpack.c.b16 %v341, %v340
    %v345 = vpack.c.b16 %v343, %v342
    %348 = vmatprep.subr.bf16.mxu0 0
    %349 = vmatpush1.bf16.msra.mxu0 %v344
    %350 = vmatprep.subr.bf16.mxu0 0
    %351 = vmatpush1.bf16.msra.mxu0 %v345
    %352 = vmatprep.subr.bf16.mxu0 0
    %353 = vmatpush1.bf16.msra.mxu0 0
    %354 = vmatprep.subr.bf16.mxu0 0
    %355 = vmatpush1.bf16.msra.mxu0 0
    %356 = vmatprep.subr.bf16.mxu0 0
    %357 = vmatpush1.bf16.msra.mxu0 0
    %358 = vmatprep.subr.bf16.mxu0 0
    %359 = vmatpush1.bf16.msra.mxu0 0
    %360 = vmatprep.subr.bf16.mxu0 0
    %361 = vmatpush1.bf16.msra.mxu0 0
    %362 = vmatprep.subr.bf16.mxu0 0
    %363 = vmatpush1.bf16.msra.mxu0 0
    %364 = vmatprep.subr.bf16.mxu0 0
    %365 = vmatpush1.bf16.msra.mxu0 0
    %366 = vmatprep.subr.bf16.mxu0 0
    %367 = vmatpush1.bf16.msra.mxu0 0
    %368 = vmatprep.subr.bf16.mxu0 0
    %369 = vmatpush1.bf16.msra.mxu0 0
    %370 = vmatprep.subr.bf16.mxu0 0
    %371 = vmatpush1.bf16.msra.mxu0 0
    %372 = vmatprep.subr.bf16.mxu0 0
    %373 = vmatpush1.bf16.msra.mxu0 0
    %374 = vmatprep.subr.bf16.mxu0 0
    %375 = vmatpush1.bf16.msra.mxu0 0
    %376 = vmatprep.subr.bf16.mxu0 0
    %377 = vmatpush1.bf16.msra.mxu0 0
    %378 = vmatprep.subr.bf16.mxu0 0
    %379 = vmatpush1.bf16.msra.mxu0 0
    %380 = vmatprep.mubr.bf16.mxu0 0
    %381 = vmatmul.mubr.bf16.gmra.mrb[0].mxu0 %v246
    %v382 = vpop.f32.mrb[0].mxu0
    %v383 = vadd.f32 0.0, %v382
    %v384 = vpop.f32.mrb[0].mxu0
    %v385 = vpop.f32.mrb[0].mxu0
    %v386 = vadd.f32 0.0, %v385
    %v387 = vpop.f32.mrb[0].mxu0
    %388 = vdwg.mxu0
    %390 = vrot.lane.b32.xlu0 %v335, 64
    %v391 = vpop.permute.xlu0 %390
    %v396 = vunpack.c.l.b16 %v215
    %v397 = vunpack.c.l.b16 %v216
    %v398 = vunpack.c.l.b16 %v217
    %v399 = vunpack.c.l.b16 %v218
    %v400 = vpack.c.b16 %v397, %v396
    %v401 = vpack.c.b16 %v399, %v398
    %v405 = vsel %vm244, %v391, 0
    %407 = vmatprep.subr.bf16.mxu0 0
    %408 = vmatpush1.bf16.msra.mxu0 %v400
    %409 = vmatprep.subr.bf16.mxu0 0
    %410 = vmatpush1.bf16.msra.mxu0 %v401
    %411 = vmatprep.subr.bf16.mxu0 0
    %412 = vmatpush1.bf16.msra.mxu0 0
    %413 = vmatprep.subr.bf16.mxu0 0
    %414 = vmatpush1.bf16.msra.mxu0 0
    %415 = vmatprep.subr.bf16.mxu0 0
    %416 = vmatpush1.bf16.msra.mxu0 0
    %417 = vmatprep.subr.bf16.mxu0 0
    %418 = vmatpush1.bf16.msra.mxu0 0
    %419 = vmatprep.subr.bf16.mxu0 0
    %420 = vmatpush1.bf16.msra.mxu0 0
    %421 = vmatprep.subr.bf16.mxu0 0
    %422 = vmatpush1.bf16.msra.mxu0 0
    %423 = vmatprep.subr.bf16.mxu0 0
    %424 = vmatpush1.bf16.msra.mxu0 0
    %425 = vmatprep.subr.bf16.mxu0 0
    %426 = vmatpush1.bf16.msra.mxu0 0
    %427 = vmatprep.subr.bf16.mxu0 0
    %428 = vmatpush1.bf16.msra.mxu0 0
    %429 = vmatprep.subr.bf16.mxu0 0
    %430 = vmatpush1.bf16.msra.mxu0 0
    %431 = vmatprep.subr.bf16.mxu0 0
    %432 = vmatpush1.bf16.msra.mxu0 0
    %433 = vmatprep.subr.bf16.mxu0 0
    %434 = vmatpush1.bf16.msra.mxu0 0
    %435 = vmatprep.subr.bf16.mxu0 0
    %436 = vmatpush1.bf16.msra.mxu0 0
    %437 = vmatprep.subr.bf16.mxu0 0
    %438 = vmatpush1.bf16.msra.mxu0 0
    %439 = vmatprep.mubr.bf16.mxu0 0
    %440 = vmatmul.mubr.bf16.gmra.mrb[0].mxu0 %v405
    %v441 = vpop.f32.mrb[0].mxu0
    %v442 = vadd.f32 %v383, %v441
    %v443 = vpop.f32.mrb[0].mxu0
    %v444 = vpop.f32.mrb[0].mxu0
    %v445 = vadd.f32 %v386, %v444
    %v446 = vpop.f32.mrb[0].mxu0
    %447 = vdwg.mxu0
    %v448 = vadd.f32 %v442, %v228
    %v449 = vadd.f32 %v445, %v228
    %v450 = vmul.f32 %v448, 0.5
    %v451 = vmul.f32 %v449, 0.5
    %v452 = vtanh.pop %v450
    %v453 = vtanh.pop %v451
    %v454 = vadd.f32 %v452, 1.0
    %v455 = vadd.f32 %v453, 1.0
    %v456 = vmul.f32 %v454, 0.5
    %v457 = vmul.f32 %v455, 0.5
    %v458 = vtanh.pop %v448
    %v459 = vtanh.pop %v449
    %v460 = vmul.f32 %v456, 0.0
    %v461 = vmul.f32 %v457, 0.0
    %464 = vrot.lane.b32.xlu0 %v458, 32
    %v465 = vpop.permute.xlu0 %464
    %466 = vrot.lane.b32.xlu0 %v459, 32
    %v467 = vpop.permute.xlu0 %466
    %v470 = vmul.f32 %v456, %v465
    %v471 = vmul.f32 %v457, %v467
    %474 = vrot.lane.b32.xlu0 %v470, 32
    %v475 = vpop.permute.xlu0 %474
    %476 = vrot.lane.b32.xlu0 %v471, 32
    %v477 = vpop.permute.xlu0 %476
    %v480 = vadd.f32 %v460, %v475
    %v481 = vadd.f32 %v461, %v477
    %v482 = vtanh.pop %v480
    %v483 = vtanh.pop %v481
    %486 = vrot.lane.b32.xlu0 %v482, 32
    %v487 = vpop.permute.xlu0 %486
    %488 = vrot.lane.b32.xlu0 %v483, 32
    %v489 = vpop.permute.xlu0 %488
    %v492 = vmul.f32 %v456, %v487
    %v493 = vmul.f32 %v457, %v489
    %s494 = scalar_lea.vmem [#allocation2], 16
    %v495 = vld [vmem:[%s494] sm:$0xff]
    %v496 = vld [vmem:[%s494 + $0x8] sm:$0xff]
    %497 = vmatprep.subr.bf16.mxu0 0
    %498 = vmatpush1.bf16.msra.mxu0 %v240
    %499 = vmatprep.subr.bf16.mxu0 0
    %500 = vmatpush1.bf16.msra.mxu0 %v241
    %501 = vmatprep.subr.bf16.mxu0 0
    %502 = vmatpush1.bf16.msra.mxu0 0
    %503 = vmatprep.subr.bf16.mxu0 0
    %504 = vmatpush1.bf16.msra.mxu0 0
    %505 = vmatprep.subr.bf16.mxu0 0
    %506 = vmatpush1.bf16.msra.mxu0 0
    %507 = vmatprep.subr.bf16.mxu0 0
    %508 = vmatpush1.bf16.msra.mxu0 0
    %509 = vmatprep.subr.bf16.mxu0 0
    %510 = vmatpush1.bf16.msra.mxu0 0
    %511 = vmatprep.subr.bf16.mxu0 0
    %512 = vmatpush1.bf16.msra.mxu0 0
    %513 = vmatprep.subr.bf16.mxu0 0
    %514 = vmatpush1.bf16.msra.mxu0 0
    %515 = vmatprep.subr.bf16.mxu0 0
    %516 = vmatpush1.bf16.msra.mxu0 0
    %517 = vmatprep.subr.bf16.mxu0 0
    %518 = vmatpush1.bf16.msra.mxu0 0
    %519 = vmatprep.subr.bf16.mxu0 0
    %520 = vmatpush1.bf16.msra.mxu0 0
    %521 = vmatprep.subr.bf16.mxu0 0
    %522 = vmatpush1.bf16.msra.mxu0 0
    %523 = vmatprep.subr.bf16.mxu0 0
    %524 = vmatpush1.bf16.msra.mxu0 0
    %525 = vmatprep.subr.bf16.mxu0 0
    %526 = vmatpush1.bf16.msra.mxu0 0
    %527 = vmatprep.subr.bf16.mxu0 0
    %528 = vmatpush1.bf16.msra.mxu0 0
    %529 = vmatprep.mubr.bf16.mxu0 0
    %530 = vmatmul.mubr.bf16.gmra.mrb[0].mxu0 %v405
    %v531 = vpop.f32.mrb[0].mxu0
    %v532 = vadd.f32 0.0, %v531
    %v533 = vpop.f32.mrb[0].mxu0
    %v534 = vpop.f32.mrb[0].mxu0
    %v535 = vadd.f32 0.0, %v534
    %v536 = vpop.f32.mrb[0].mxu0
    %537 = vdwg.mxu0
    %v538 = vadd.f32 %v495, %v532
    %v539 = vadd.f32 %v496, %v535
    %v540 = vmul.f32 %v538, 0.5
    %v541 = vmul.f32 %v539, 0.5
    %v542 = vtanh.pop %v540
    %v543 = vtanh.pop %v541
    %v544 = vadd.f32 %v542, 1.0
    %v545 = vadd.f32 %v543, 1.0
    %v546 = vmul.f32 %v544, 0.5
    %v547 = vmul.f32 %v545, 0.5
    %v548 = vtanh.pop %v538
    %v549 = vtanh.pop %v539
    %v550 = vmul.f32 %v546, %v321
    %v551 = vmul.f32 %v547, %v322
    %554 = vrot.lane.b32.xlu0 %v548, 32
    %v555 = vpop.permute.xlu0 %554
    %556 = vrot.lane.b32.xlu0 %v549, 32
    %v557 = vpop.permute.xlu0 %556
    %v560 = vmul.f32 %v546, %v555
    %v561 = vmul.f32 %v547, %v557
    %564 = vrot.lane.b32.xlu0 %v560, 32
    %v565 = vpop.permute.xlu0 %564
    %566 = vrot.lane.b32.xlu0 %v561, 32
    %v567 = vpop.permute.xlu0 %566
    %v570 = vadd.f32 %v550, %v565
    %v571 = vadd.f32 %v551, %v567
    %v572 = vtanh.pop %v570
    %v573 = vtanh.pop %v571
    %576 = vrot.lane.b32.xlu0 %v572, 32
    %v577 = vpop.permute.xlu0 %576
    %578 = vrot.lane.b32.xlu0 %v573, 32
    %v579 = vpop.permute.xlu0 %578
    %v582 = vmul.f32 %v546, %v577
    %v583 = vmul.f32 %v547, %v579
    %v584 = vpack.c.bf16 %v583, %v582
    %v585 = vpack.c.bf16 %v493, %v492
    %587 = vrot.lane.b32.xlu0 %v585, 64
    %v588 = vpop.permute.xlu0 %587
    %v590 = vsel %vm244, %v588, 0
    %592 = vmatprep.subr.bf16.mxu0 0
    %593 = vmatpush1.bf16.msra.mxu0 %v344
    %594 = vmatprep.subr.bf16.mxu0 0
    %595 = vmatpush1.bf16.msra.mxu0 %v345
    %596 = vmatprep.subr.bf16.mxu0 0
    %597 = vmatpush1.bf16.msra.mxu0 0
    %598 = vmatprep.subr.bf16.mxu0 0
    %599 = vmatpush1.bf16.msra.mxu0 0
    %600 = vmatprep.subr.bf16.mxu0 0
    %601 = vmatpush1.bf16.msra.mxu0 0
    %602 = vmatprep.subr.bf16.mxu0 0
    %603 = vmatpush1.bf16.msra.mxu0 0
    %604 = vmatprep.subr.bf16.mxu0 0
    %605 = vmatpush1.bf16.msra.mxu0 0
    %606 = vmatprep.subr.bf16.mxu0 0
    %607 = vmatpush1.bf16.msra.mxu0 0
    %608 = vmatprep.subr.bf16.mxu0 0
    %609 = vmatpush1.bf16.msra.mxu0 0
    %610 = vmatprep.subr.bf16.mxu0 0
    %611 = vmatpush1.bf16.msra.mxu0 0
    %612 = vmatprep.subr.bf16.mxu0 0
    %613 = vmatpush1.bf16.msra.mxu0 0
    %614 = vmatprep.subr.bf16.mxu0 0
    %615 = vmatpush1.bf16.msra.mxu0 0
    %616 = vmatprep.subr.bf16.mxu0 0
    %617 = vmatpush1.bf16.msra.mxu0 0
    %618 = vmatprep.subr.bf16.mxu0 0
    %619 = vmatpush1.bf16.msra.mxu0 0
    %620 = vmatprep.subr.bf16.mxu0 0
    %621 = vmatpush1.bf16.msra.mxu0 0
    %622 = vmatprep.subr.bf16.mxu0 0
    %623 = vmatpush1.bf16.msra.mxu0 0
    %624 = vmatprep.mubr.bf16.mxu0 0
    %625 = vmatmul.mubr.bf16.gmra.mrb[0].mxu0 %v590
    %v626 = vpop.f32.mrb[0].mxu0
    %v627 = vadd.f32 0.0, %v626
    %v628 = vpop.f32.mrb[0].mxu0
    %v629 = vpop.f32.mrb[0].mxu0
    %v630 = vadd.f32 0.0, %v629
    %v631 = vpop.f32.mrb[0].mxu0
    %632 = vdwg.mxu0
    %634 = vrot.lane.b32.xlu0 %v584, 64
    %v635 = vpop.permute.xlu0 %634
    %v637 = vsel %vm244, %v635, 0
    %639 = vmatprep.subr.bf16.mxu0 0
    %640 = vmatpush1.bf16.msra.mxu0 %v400
    %641 = vmatprep.subr.bf16.mxu0 0
    %642 = vmatpush1.bf16.msra.mxu0 %v401
    %643 = vmatprep.subr.bf16.mxu0 0
    %644 = vmatpush1.bf16.msra.mxu0 0
    %645 = vmatprep.subr.bf16.mxu0 0
    %646 = vmatpush1.bf16.msra.mxu0 0
    %647 = vmatprep.subr.bf16.mxu0 0
    %648 = vmatpush1.bf16.msra.mxu0 0
    %649 = vmatprep.subr.bf16.mxu0 0
    %650 = vmatpush1.bf16.msra.mxu0 0
    %651 = vmatprep.subr.bf16.mxu0 0
    %652 = vmatpush1.bf16.msra.mxu0 0
    %653 = vmatprep.subr.bf16.mxu0 0
    %654 = vmatpush1.bf16.msra.mxu0 0
    %655 = vmatprep.subr.bf16.mxu0 0
    %656 = vmatpush1.bf16.msra.mxu0 0
    %657 = vmatprep.subr.bf16.mxu0 0
    %658 = vmatpush1.bf16.msra.mxu0 0
    %659 = vmatprep.subr.bf16.mxu0 0
    %660 = vmatpush1.bf16.msra.mxu0 0
    %661 = vmatprep.subr.bf16.mxu0 0
    %662 = vmatpush1.bf16.msra.mxu0 0
    %663 = vmatprep.subr.bf16.mxu0 0
    %664 = vmatpush1.bf16.msra.mxu0 0
    %665 = vmatprep.subr.bf16.mxu0 0
    %666 = vmatpush1.bf16.msra.mxu0 0
    %667 = vmatprep.subr.bf16.mxu0 0
    %668 = vmatpush1.bf16.msra.mxu0 0
    %669 = vmatprep.subr.bf16.mxu0 0
    %670 = vmatpush1.bf16.msra.mxu0 0
    %671 = vmatprep.mubr.bf16.mxu0 0
    %672 = vmatmul.mubr.bf16.gmra.mrb[0].mxu0 %v637
    %v673 = vpop.f32.mrb[0].mxu0
    %v674 = vadd.f32 %v627, %v673
    %v675 = vpop.f32.mrb[0].mxu0
    %v676 = vpop.f32.mrb[0].mxu0
    %v677 = vadd.f32 %v630, %v676
    %v678 = vpop.f32.mrb[0].mxu0
    %679 = vdwg.mxu0
    %v680 = vadd.f32 %v674, %v228
    %v681 = vadd.f32 %v677, %v228
    %v682 = vmul.f32 %v680, 0.5
    %v683 = vmul.f32 %v681, 0.5
    %v684 = vtanh.pop %v682
    %v685 = vtanh.pop %v683
    %v686 = vadd.f32 %v684, 1.0
    %v687 = vadd.f32 %v685, 1.0
    %v688 = vmul.f32 %v686, 0.5
    %v689 = vmul.f32 %v687, 0.5
    %v690 = vtanh.pop %v680
    %v691 = vtanh.pop %v681
    %v692 = vmul.f32 %v688, %v480
    %v693 = vmul.f32 %v689, %v481
    %696 = vrot.lane.b32.xlu0 %v690, 32
    %v697 = vpop.permute.xlu0 %696
    %698 = vrot.lane.b32.xlu0 %v691, 32
    %v699 = vpop.permute.xlu0 %698
    %v702 = vmul.f32 %v688, %v697
    %v703 = vmul.f32 %v689, %v699
    %706 = vrot.lane.b32.xlu0 %v702, 32
    %v707 = vpop.permute.xlu0 %706
    %708 = vrot.lane.b32.xlu0 %v703, 32
    %v709 = vpop.permute.xlu0 %708
    %v712 = vadd.f32 %v692, %v707
    %v713 = vadd.f32 %v693, %v709
    %v714 = vtanh.pop %v712
    %v715 = vtanh.pop %v713
    %718 = vrot.lane.b32.xlu0 %v714, 32
    %v719 = vpop.permute.xlu0 %718
    %720 = vrot.lane.b32.xlu0 %v715, 32
    %v721 = vpop.permute.xlu0 %720
    %v724 = vmul.f32 %v688, %v719
    %v725 = vmul.f32 %v689, %v721
    %s726 = scalar_lea.vmem [#allocation2], 32
    %v727 = vld [vmem:[%s726] sm:$0xff]
    %v728 = vld [vmem:[%s726 + $0x8] sm:$0xff]
    %729 = vmatprep.subr.bf16.mxu0 0
    %730 = vmatpush1.bf16.msra.mxu0 %v240
    %731 = vmatprep.subr.bf16.mxu0 0
    %732 = vmatpush1.bf16.msra.mxu0 %v241
    %733 = vmatprep.subr.bf16.mxu0 0
    %734 = vmatpush1.bf16.msra.mxu0 0
    %735 = vmatprep.subr.bf16.mxu0 0
    %736 = vmatpush1.bf16.msra.mxu0 0
    %737 = vmatprep.subr.bf16.mxu0 0
    %738 = vmatpush1.bf16.msra.mxu0 0
    %739 = vmatprep.subr.bf16.mxu0 0
    %740 = vmatpush1.bf16.msra.mxu0 0
    %741 = vmatprep.subr.bf16.mxu0 0
    %742 = vmatpush1.bf16.msra.mxu0 0
    %743 = vmatprep.subr.bf16.mxu0 0
    %744 = vmatpush1.bf16.msra.mxu0 0
    %745 = vmatprep.subr.bf16.mxu0 0
    %746 = vmatpush1.bf16.msra.mxu0 0
    %747 = vmatprep.subr.bf16.mxu0 0
    %748 = vmatpush1.bf16.msra.mxu0 0
    %749 = vmatprep.subr.bf16.mxu0 0
    %750 = vmatpush1.bf16.msra.mxu0 0
    %751 = vmatprep.subr.bf16.mxu0 0
    %752 = vmatpush1.bf16.msra.mxu0 0
    %753 = vmatprep.subr.bf16.mxu0 0
    %754 = vmatpush1.bf16.msra.mxu0 0
    %755 = vmatprep.subr.bf16.mxu0 0
    %756 = vmatpush1.bf16.msra.mxu0 0
    %757 = vmatprep.subr.bf16.mxu0 0
    %758 = vmatpush1.bf16.msra.mxu0 0
    %759 = vmatprep.subr.bf16.mxu0 0
    %760 = vmatpush1.bf16.msra.mxu0 0
    %761 = vmatprep.mubr.bf16.mxu0 0
    %762 = vmatmul.mubr.bf16.gmra.mrb[0].mxu0 %v637
    %v763 = vpop.f32.mrb[0].mxu0
    %v764 = vadd.f32 0.0, %v763
    %v765 = vpop.f32.mrb[0].mxu0
    %v766 = vpop.f32.mrb[0].mxu0
    %v767 = vadd.f32 0.0, %v766
    %v768 = vpop.f32.mrb[0].mxu0
    %769 = vdwg.mxu0
    %v770 = vadd.f32 %v727, %v764
    %v771 = vadd.f32 %v728, %v767
    %v772 = vmul.f32 %v770, 0.5
    %v773 = vmul.f32 %v771, 0.5
    %v774 = vtanh.pop %v772
    %v775 = vtanh.pop %v773
    %v776 = vadd.f32 %v774, 1.0
    %v777 = vadd.f32 %v775, 1.0
    %v778 = vmul.f32 %v776, 0.5
    %v779 = vmul.f32 %v777, 0.5
    %v780 = vtanh.pop %v770
    %v781 = vtanh.pop %v771
    %v782 = vmul.f32 %v778, %v570
    %v783 = vmul.f32 %v779, %v571
    %786 = vrot.lane.b32.xlu0 %v780, 32
    %v787 = vpop.permute.xlu0 %786
    %788 = vrot.lane.b32.xlu0 %v781, 32
    %v789 = vpop.permute.xlu0 %788
    %v792 = vmul.f32 %v778, %v787
    %v793 = vmul.f32 %v779, %v789
    %796 = vrot.lane.b32.xlu0 %v792, 32
    %v797 = vpop.permute.xlu0 %796
    %798 = vrot.lane.b32.xlu0 %v793, 32
    %v799 = vpop.permute.xlu0 %798
    %v802 = vadd.f32 %v782, %v797
    %v803 = vadd.f32 %v783, %v799
    %v804 = vtanh.pop %v802
    %v805 = vtanh.pop %v803
    %808 = vrot.lane.b32.xlu0 %v804, 32
    %v809 = vpop.permute.xlu0 %808
    %810 = vrot.lane.b32.xlu0 %v805, 32
    %v811 = vpop.permute.xlu0 %810
    %v814 = vmul.f32 %v778, %v809
    %v815 = vmul.f32 %v779, %v811
    %v816 = vpack.c.bf16 %v815, %v814
    %v817 = vpack.c.bf16 %v725, %v724
    %819 = vrot.lane.b32.xlu0 %v817, 64
    %v820 = vpop.permute.xlu0 %819
    %v822 = vsel %vm244, %v820, 0
    %824 = vmatprep.subr.bf16.mxu0 0
    %825 = vmatpush1.bf16.msra.mxu0 %v344
    %826 = vmatprep.subr.bf16.mxu0 0
    %827 = vmatpush1.bf16.msra.mxu0 %v345
    %828 = vmatprep.subr.bf16.mxu0 0
    %829 = vmatpush1.bf16.msra.mxu0 0
    %830 = vmatprep.subr.bf16.mxu0 0
    %831 = vmatpush1.bf16.msra.mxu0 0
    %832 = vmatprep.subr.bf16.mxu0 0
    %833 = vmatpush1.bf16.msra.mxu0 0
    %834 = vmatprep.subr.bf16.mxu0 0
    %835 = vmatpush1.bf16.msra.mxu0 0
    %836 = vmatprep.subr.bf16.mxu0 0
    %837 = vmatpush1.bf16.msra.mxu0 0
    %838 = vmatprep.subr.bf16.mxu0 0
    %839 = vmatpush1.bf16.msra.mxu0 0
    %840 = vmatprep.subr.bf16.mxu0 0
    %841 = vmatpush1.bf16.msra.mxu0 0
    %842 = vmatprep.subr.bf16.mxu0 0
    %843 = vmatpush1.bf16.msra.mxu0 0
    %844 = vmatprep.subr.bf16.mxu0 0
    %845 = vmatpush1.bf16.msra.mxu0 0
    %846 = vmatprep.subr.bf16.mxu0 0
    %847 = vmatpush1.bf16.msra.mxu0 0
    %848 = vmatprep.subr.bf16.mxu0 0
    %849 = vmatpush1.bf16.msra.mxu0 0
    %850 = vmatprep.subr.bf16.mxu0 0
    %851 = vmatpush1.bf16.msra.mxu0 0
    %852 = vmatprep.subr.bf16.mxu0 0
    %853 = vmatpush1.bf16.msra.mxu0 0
    %854 = vmatprep.subr.bf16.mxu0 0
    %855 = vmatpush1.bf16.msra.mxu0 0
    %856 = vmatprep.mubr.bf16.mxu0 0
    %857 = vmatmul.mubr.bf16.gmra.mrb[0].mxu0 %v822
    %v858 = vpop.f32.mrb[0].mxu0
    %v859 = vadd.f32 0.0, %v858
    %v860 = vpop.f32.mrb[0].mxu0
    %v861 = vpop.f32.mrb[0].mxu0
    %v862 = vadd.f32 0.0, %v861
    %v863 = vpop.f32.mrb[0].mxu0
    %864 = vdwg.mxu0
    %866 = vrot.lane.b32.xlu0 %v816, 64
    %v867 = vpop.permute.xlu0 %866
    %v869 = vsel %vm244, %v867, 0
    %871 = vmatprep.subr.bf16.mxu0 0
    %872 = vmatpush1.bf16.msra.mxu0 %v400
    %873 = vmatprep.subr.bf16.mxu0 0
    %874 = vmatpush1.bf16.msra.mxu0 %v401
    %875 = vmatprep.subr.bf16.mxu0 0
    %876 = vmatpush1.bf16.msra.mxu0 0
    %877 = vmatprep.subr.bf16.mxu0 0
    %878 = vmatpush1.bf16.msra.mxu0 0
    %879 = vmatprep.subr.bf16.mxu0 0
    %880 = vmatpush1.bf16.msra.mxu0 0
    %881 = vmatprep.subr.bf16.mxu0 0
    %882 = vmatpush1.bf16.msra.mxu0 0
    %883 = vmatprep.subr.bf16.mxu0 0
    %884 = vmatpush1.bf16.msra.mxu0 0
    %885 = vmatprep.subr.bf16.mxu0 0
    %886 = vmatpush1.bf16.msra.mxu0 0
    %887 = vmatprep.subr.bf16.mxu0 0
    %888 = vmatpush1.bf16.msra.mxu0 0
    %889 = vmatprep.subr.bf16.mxu0 0
    %890 = vmatpush1.bf16.msra.mxu0 0
    %891 = vmatprep.subr.bf16.mxu0 0
    %892 = vmatpush1.bf16.msra.mxu0 0
    %893 = vmatprep.subr.bf16.mxu0 0
    %894 = vmatpush1.bf16.msra.mxu0 0
    %895 = vmatprep.subr.bf16.mxu0 0
    %896 = vmatpush1.bf16.msra.mxu0 0
    %897 = vmatprep.subr.bf16.mxu0 0
    %898 = vmatpush1.bf16.msra.mxu0 0
    %899 = vmatprep.subr.bf16.mxu0 0
    %900 = vmatpush1.bf16.msra.mxu0 0
    %901 = vmatprep.subr.bf16.mxu0 0
    %902 = vmatpush1.bf16.msra.mxu0 0
    %903 = vmatprep.mubr.bf16.mxu0 0
    %904 = vmatmul.mubr.bf16.gmra.mrb[0].mxu0 %v869
    %v905 = vpop.f32.mrb[0].mxu0
    %v906 = vadd.f32 %v859, %v905
    %v907 = vpop.f32.mrb[0].mxu0
    %v908 = vpop.f32.mrb[0].mxu0
    %v909 = vadd.f32 %v862, %v908
    %v910 = vpop.f32.mrb[0].mxu0
    %911 = vdwg.mxu0
    %v912 = vadd.f32 %v906, %v228
    %v913 = vadd.f32 %v909, %v228
    %v914 = vmul.f32 %v912, 0.5
    %v915 = vmul.f32 %v913, 0.5
    %v916 = vtanh.pop %v914
    %v917 = vtanh.pop %v915
    %v918 = vadd.f32 %v916, 1.0
    %v919 = vadd.f32 %v917, 1.0
    %v920 = vmul.f32 %v918, 0.5
    %v921 = vmul.f32 %v919, 0.5
    %v922 = vtanh.pop %v912
    %v923 = vtanh.pop %v913
    %v924 = vmul.f32 %v920, %v712
    %v925 = vmul.f32 %v921, %v713
    %928 = vrot.lane.b32.xlu0 %v922, 32
    %v929 = vpop.permute.xlu0 %928
    %930 = vrot.lane.b32.xlu0 %v923, 32
    %v931 = vpop.permute.xlu0 %930
    %v934 = vmul.f32 %v920, %v929
    %v935 = vmul.f32 %v921, %v931
    %938 = vrot.lane.b32.xlu0 %v934, 32
    %v939 = vpop.permute.xlu0 %938
    %940 = vrot.lane.b32.xlu0 %v935, 32
    %v941 = vpop.permute.xlu0 %940
    %v944 = vadd.f32 %v924, %v939
    %v945 = vadd.f32 %v925, %v941
    %v946 = vtanh.pop %v944
    %v947 = vtanh.pop %v945
    %950 = vrot.lane.b32.xlu0 %v946, 32
    %v951 = vpop.permute.xlu0 %950
    %952 = vrot.lane.b32.xlu0 %v947, 32
    %v953 = vpop.permute.xlu0 %952
    %v956 = vmul.f32 %v920, %v951
    %v957 = vmul.f32 %v921, %v953
    %s958 = scalar_lea.vmem [#allocation2], 48
    %v959 = vld [vmem:[%s958] sm:$0xff]
    %v960 = vld [vmem:[%s958 + $0x8] sm:$0xff]
    %961 = vmatprep.subr.bf16.mxu0 0
    %962 = vmatpush1.bf16.msra.mxu0 %v240
    %963 = vmatprep.subr.bf16.mxu0 0
    %964 = vmatpush1.bf16.msra.mxu0 %v241
    %965 = vmatprep.subr.bf16.mxu0 0
    %966 = vmatpush1.bf16.msra.mxu0 0
    %967 = vmatprep.subr.bf16.mxu0 0
    %968 = vmatpush1.bf16.msra.mxu0 0
    %969 = vmatprep.subr.bf16.mxu0 0
    %970 = vmatpush1.bf16.msra.mxu0 0
    %971 = vmatprep.subr.bf16.mxu0 0
    %972 = vmatpush1.bf16.msra.mxu0 0
    %973 = vmatprep.subr.bf16.mxu0 0
    %974 = vmatpush1.bf16.msra.mxu0 0
    %975 = vmatprep.subr.bf16.mxu0 0
    %976 = vmatpush1.bf16.msra.mxu0 0
    %977 = vmatprep.subr.bf16.mxu0 0
    %978 = vmatpush1.bf16.msra.mxu0 0
    %979 = vmatprep.subr.bf16.mxu0 0
    %980 = vmatpush1.bf16.msra.mxu0 0
    %981 = vmatprep.subr.bf16.mxu0 0
    %982 = vmatpush1.bf16.msra.mxu0 0
    %983 = vmatprep.subr.bf16.mxu0 0
    %984 = vmatpush1.bf16.msra.mxu0 0
    %985 = vmatprep.subr.bf16.mxu0 0
    %986 = vmatpush1.bf16.msra.mxu0 0
    %987 = vmatprep.subr.bf16.mxu0 0
    %988 = vmatpush1.bf16.msra.mxu0 0
    %989 = vmatprep.subr.bf16.mxu0 0
    %990 = vmatpush1.bf16.msra.mxu0 0
    %991 = vmatprep.subr.bf16.mxu0 0
    %992 = vmatpush1.bf16.msra.mxu0 0
    %993 = vmatprep.mubr.bf16.mxu0 0
    %994 = vmatmul.mubr.bf16.gmra.mrb[0].mxu0 %v869
    %v995 = vpop.f32.mrb[0].mxu0
    %v996 = vadd.f32 0.0, %v995
    %v997 = vpop.f32.mrb[0].mxu0
    %v998 = vpop.f32.mrb[0].mxu0
    %v999 = vadd.f32 0.0, %v998
    %v1000 = vpop.f32.mrb[0].mxu0
    %1001 = vdwg.mxu0
    %v1002 = vadd.f32 %v959, %v996
    %v1003 = vadd.f32 %v960, %v999
    %v1004 = vmul.f32 %v1002, 0.5
    %v1005 = vmul.f32 %v1003, 0.5
    %v1006 = vtanh.pop %v1004
    %v1007 = vtanh.pop %v1005
    %v1008 = vadd.f32 %v1006, 1.0
    %v1009 = vadd.f32 %v1007, 1.0
    %v1010 = vmul.f32 %v1008, 0.5
    %v1011 = vmul.f32 %v1009, 0.5
    %v1012 = vtanh.pop %v1002
    %v1013 = vtanh.pop %v1003
    %v1014 = vmul.f32 %v1010, %v802
    %v1015 = vmul.f32 %v1011, %v803
    %1018 = vrot.lane.b32.xlu0 %v1012, 32
    %v1019 = vpop.permute.xlu0 %1018
    %1020 = vrot.lane.b32.xlu0 %v1013, 32
    %v1021 = vpop.permute.xlu0 %1020
    %v1024 = vmul.f32 %v1010, %v1019
    %v1025 = vmul.f32 %v1011, %v1021
    %1028 = vrot.lane.b32.xlu0 %v1024, 32
    %v1029 = vpop.permute.xlu0 %1028
    %1030 = vrot.lane.b32.xlu0 %v1025, 32
    %v1031 = vpop.permute.xlu0 %1030
    %v1034 = vadd.f32 %v1014, %v1029
    %v1035 = vadd.f32 %v1015, %v1031
    %v1036 = vtanh.pop %v1034
    %v1037 = vtanh.pop %v1035
    %1040 = vrot.lane.b32.xlu0 %v1036, 32
    %v1041 = vpop.permute.xlu0 %1040
    %1042 = vrot.lane.b32.xlu0 %v1037, 32
    %v1043 = vpop.permute.xlu0 %1042
    %v1046 = vmul.f32 %v1010, %v1041
    %v1047 = vmul.f32 %v1011, %v1043
    %v1048 = vpack.c.bf16 %v1047, %v1046
    %v1049 = vpack.c.bf16 %v957, %v956
    %1051 = vrot.lane.b32.xlu0 %v1049, 64
    %v1052 = vpop.permute.xlu0 %1051
    %v1054 = vsel %vm244, %v1052, 0
    %1056 = vmatprep.subr.bf16.mxu0 0
    %1057 = vmatpush1.bf16.msra.mxu0 %v344
    %1058 = vmatprep.subr.bf16.mxu0 0
    %1059 = vmatpush1.bf16.msra.mxu0 %v345
    %1060 = vmatprep.subr.bf16.mxu0 0
    %1061 = vmatpush1.bf16.msra.mxu0 0
    %1062 = vmatprep.subr.bf16.mxu0 0
    %1063 = vmatpush1.bf16.msra.mxu0 0
    %1064 = vmatprep.subr.bf16.mxu0 0
    %1065 = vmatpush1.bf16.msra.mxu0 0
    %1066 = vmatprep.subr.bf16.mxu0 0
    %1067 = vmatpush1.bf16.msra.mxu0 0
    %1068 = vmatprep.subr.bf16.mxu0 0
    %1069 = vmatpush1.bf16.msra.mxu0 0
    %1070 = vmatprep.subr.bf16.mxu0 0
    %1071 = vmatpush1.bf16.msra.mxu0 0
    %1072 = vmatprep.subr.bf16.mxu0 0
    %1073 = vmatpush1.bf16.msra.mxu0 0
    %1074 = vmatprep.subr.bf16.mxu0 0
    %1075 = vmatpush1.bf16.msra.mxu0 0
    %1076 = vmatprep.subr.bf16.mxu0 0
    %1077 = vmatpush1.bf16.msra.mxu0 0
    %1078 = vmatprep.subr.bf16.mxu0 0
    %1079 = vmatpush1.bf16.msra.mxu0 0
    %1080 = vmatprep.subr.bf16.mxu0 0
    %1081 = vmatpush1.bf16.msra.mxu0 0
    %1082 = vmatprep.subr.bf16.mxu0 0
    %1083 = vmatpush1.bf16.msra.mxu0 0
    %1084 = vmatprep.subr.bf16.mxu0 0
    %1085 = vmatpush1.bf16.msra.mxu0 0
    %1086 = vmatprep.subr.bf16.mxu0 0
    %1087 = vmatpush1.bf16.msra.mxu0 0
    %1088 = vmatprep.mubr.bf16.mxu0 0
    %1089 = vmatmul.mubr.bf16.gmra.mrb[0].mxu0 %v1054
    %v1090 = vpop.f32.mrb[0].mxu0
    %v1091 = vadd.f32 0.0, %v1090
    %v1092 = vpop.f32.mrb[0].mxu0
    %v1093 = vpop.f32.mrb[0].mxu0
    %v1094 = vadd.f32 0.0, %v1093
    %v1095 = vpop.f32.mrb[0].mxu0
    %1096 = vdwg.mxu0
    %1098 = vrot.lane.b32.xlu0 %v1048, 64
    %v1099 = vpop.permute.xlu0 %1098
    %v1101 = vsel %vm244, %v1099, 0
    %1103 = vmatprep.subr.bf16.mxu0 0
    %1104 = vmatpush1.bf16.msra.mxu0 %v400
    %1105 = vmatprep.subr.bf16.mxu0 0
    %1106 = vmatpush1.bf16.msra.mxu0 %v401
    %1107 = vmatprep.subr.bf16.mxu0 0
    %1108 = vmatpush1.bf16.msra.mxu0 0
    %1109 = vmatprep.subr.bf16.mxu0 0
    %1110 = vmatpush1.bf16.msra.mxu0 0
    %1111 = vmatprep.subr.bf16.mxu0 0
    %1112 = vmatpush1.bf16.msra.mxu0 0
    %1113 = vmatprep.subr.bf16.mxu0 0
    %1114 = vmatpush1.bf16.msra.mxu0 0
    %1115 = vmatprep.subr.bf16.mxu0 0
    %1116 = vmatpush1.bf16.msra.mxu0 0
    %1117 = vmatprep.subr.bf16.mxu0 0
    %1118 = vmatpush1.bf16.msra.mxu0 0
    %1119 = vmatprep.subr.bf16.mxu0 0
    %1120 = vmatpush1.bf16.msra.mxu0 0
    %1121 = vmatprep.subr.bf16.mxu0 0
    %1122 = vmatpush1.bf16.msra.mxu0 0
    %1123 = vmatprep.subr.bf16.mxu0 0
    %1124 = vmatpush1.bf16.msra.mxu0 0
    %1125 = vmatprep.subr.bf16.mxu0 0
    %1126 = vmatpush1.bf16.msra.mxu0 0
    %1127 = vmatprep.subr.bf16.mxu0 0
    %1128 = vmatpush1.bf16.msra.mxu0 0
    %1129 = vmatprep.subr.bf16.mxu0 0
    %1130 = vmatpush1.bf16.msra.mxu0 0
    %1131 = vmatprep.subr.bf16.mxu0 0
    %1132 = vmatpush1.bf16.msra.mxu0 0
    %1133 = vmatprep.subr.bf16.mxu0 0
    %1134 = vmatpush1.bf16.msra.mxu0 0
    %1135 = vmatprep.mubr.bf16.mxu0 0
    %1136 = vmatmul.mubr.bf16.gmra.mrb[0].mxu0 %v1101
    %v1137 = vpop.f32.mrb[0].mxu0
    %v1138 = vadd.f32 %v1091, %v1137
    %v1139 = vpop.f32.mrb[0].mxu0
    %v1140 = vpop.f32.mrb[0].mxu0
    %v1141 = vadd.f32 %v1094, %v1140
    %v1142 = vpop.f32.mrb[0].mxu0
    %1143 = vdwg.mxu0
    %v1144 = vadd.f32 %v1138, %v228
    %v1145 = vadd.f32 %v1141, %v228
    %v1146 = vmul.f32 %v1144, 0.5
    %v1147 = vmul.f32 %v1145, 0.5
    %v1148 = vtanh.pop %v1146
    %v1149 = vtanh.pop %v1147
    %v1150 = vadd.f32 %v1148, 1.0
    %v1151 = vadd.f32 %v1149, 1.0
    %v1152 = vmul.f32 %v1150, 0.5
    %v1153 = vmul.f32 %v1151, 0.5
    %v1154 = vtanh.pop %v1144
    %v1155 = vtanh.pop %v1145
    %v1156 = vmul.f32 %v1152, %v944
    %v1157 = vmul.f32 %v1153, %v945
    %1160 = vrot.lane.b32.xlu0 %v1154, 32
    %v1161 = vpop.permute.xlu0 %1160
    %1162 = vrot.lane.b32.xlu0 %v1155, 32
    %v1163 = vpop.permute.xlu0 %1162
    %v1166 = vmul.f32 %v1152, %v1161
    %v1167 = vmul.f32 %v1153, %v1163
    %1170 = vrot.lane.b32.xlu0 %v1166, 32
    %v1171 = vpop.permute.xlu0 %1170
    %1172 = vrot.lane.b32.xlu0 %v1167, 32
    %v1173 = vpop.permute.xlu0 %1172
    %v1176 = vadd.f32 %v1156, %v1171
    %v1177 = vadd.f32 %v1157, %v1173
    %v1178 = vtanh.pop %v1176
    %v1179 = vtanh.pop %v1177
    %1182 = vrot.lane.b32.xlu0 %v1178, 32
    %v1183 = vpop.permute.xlu0 %1182
    %1184 = vrot.lane.b32.xlu0 %v1179, 32
    %v1185 = vpop.permute.xlu0 %1184
    %v1188 = vmul.f32 %v1152, %v1183
    %v1189 = vmul.f32 %v1153, %v1185
    %s1190 = scalar_lea.vmem [#allocation2], 64
    %v1191 = vld [vmem:[%s1190] sm:$0xff]
    %v1192 = vld [vmem:[%s1190 + $0x8] sm:$0xff]
    %1193 = vmatprep.subr.bf16.mxu0 0
    %1194 = vmatpush1.bf16.msra.mxu0 %v240
    %1195 = vmatprep.subr.bf16.mxu0 0
    %1196 = vmatpush1.bf16.msra.mxu0 %v241
    %1197 = vmatprep.subr.bf16.mxu0 0
    %1198 = vmatpush1.bf16.msra.mxu0 0
    %1199 = vmatprep.subr.bf16.mxu0 0
    %1200 = vmatpush1.bf16.msra.mxu0 0
    %1201 = vmatprep.subr.bf16.mxu0 0
    %1202 = vmatpush1.bf16.msra.mxu0 0
    %1203 = vmatprep.subr.bf16.mxu0 0
    %1204 = vmatpush1.bf16.msra.mxu0 0
    %1205 = vmatprep.subr.bf16.mxu0 0
    %1206 = vmatpush1.bf16.msra.mxu0 0
    %1207 = vmatprep.subr.bf16.mxu0 0
    %1208 = vmatpush1.bf16.msra.mxu0 0
    %1209 = vmatprep.subr.bf16.mxu0 0
    %1210 = vmatpush1.bf16.msra.mxu0 0
    %1211 = vmatprep.subr.bf16.mxu0 0
    %1212 = vmatpush1.bf16.msra.mxu0 0
    %1213 = vmatprep.subr.bf16.mxu0 0
    %1214 = vmatpush1.bf16.msra.mxu0 0
    %1215 = vmatprep.subr.bf16.mxu0 0
    %1216 = vmatpush1.bf16.msra.mxu0 0
    %1217 = vmatprep.subr.bf16.mxu0 0
    %1218 = vmatpush1.bf16.msra.mxu0 0
    %1219 = vmatprep.subr.bf16.mxu0 0
    %1220 = vmatpush1.bf16.msra.mxu0 0
    %1221 = vmatprep.subr.bf16.mxu0 0
    %1222 = vmatpush1.bf16.msra.mxu0 0
    %1223 = vmatprep.subr.bf16.mxu0 0
    %1224 = vmatpush1.bf16.msra.mxu0 0
    %1225 = vmatprep.mubr.bf16.mxu0 0
    %1226 = vmatmul.mubr.bf16.gmra.mrb[0].mxu0 %v1101
    %v1227 = vpop.f32.mrb[0].mxu0
    %v1228 = vadd.f32 0.0, %v1227
    %v1229 = vpop.f32.mrb[0].mxu0
    %v1230 = vpop.f32.mrb[0].mxu0
    %v1231 = vadd.f32 0.0, %v1230
    %v1232 = vpop.f32.mrb[0].mxu0
    %1233 = vdwg.mxu0
    %v1234 = vadd.f32 %v1191, %v1228
    %v1235 = vadd.f32 %v1192, %v1231
    %v1236 = vmul.f32 %v1234, 0.5
    %v1237 = vmul.f32 %v1235, 0.5
    %v1238 = vtanh.pop %v1236
    %v1239 = vtanh.pop %v1237
    %v1240 = vadd.f32 %v1238, 1.0
    %v1241 = vadd.f32 %v1239, 1.0
    %v1242 = vmul.f32 %v1240, 0.5
    %v1243 = vmul.f32 %v1241, 0.5
    %v1244 = vtanh.pop %v1234
    %v1245 = vtanh.pop %v1235
    %v1246 = vmul.f32 %v1242, %v1034
    %v1247 = vmul.f32 %v1243, %v1035
    %1250 = vrot.lane.b32.xlu0 %v1244, 32
    %v1251 = vpop.permute.xlu0 %1250
    %1252 = vrot.lane.b32.xlu0 %v1245, 32
    %v1253 = vpop.permute.xlu0 %1252
    %v1256 = vmul.f32 %v1242, %v1251
    %v1257 = vmul.f32 %v1243, %v1253
    %1260 = vrot.lane.b32.xlu0 %v1256, 32
    %v1261 = vpop.permute.xlu0 %1260
    %1262 = vrot.lane.b32.xlu0 %v1257, 32
    %v1263 = vpop.permute.xlu0 %1262
    %v1266 = vadd.f32 %v1246, %v1261
    %v1267 = vadd.f32 %v1247, %v1263
    %v1268 = vtanh.pop %v1266
    %v1269 = vtanh.pop %v1267
    %1272 = vrot.lane.b32.xlu0 %v1268, 32
    %v1273 = vpop.permute.xlu0 %1272
    %1274 = vrot.lane.b32.xlu0 %v1269, 32
    %v1275 = vpop.permute.xlu0 %1274
    %v1278 = vmul.f32 %v1242, %v1273
    %v1279 = vmul.f32 %v1243, %v1275
    %v1280 = vpack.c.bf16 %v1279, %v1278
    %v1281 = vpack.c.bf16 %v1189, %v1188
    %1283 = vrot.lane.b32.xlu0 %v1281, 64
    %v1284 = vpop.permute.xlu0 %1283
    %v1286 = vsel %vm244, %v1284, 0
    %1288 = vmatprep.subr.bf16.mxu0 0
    %1289 = vmatpush1.bf16.msra.mxu0 %v344
    %1290 = vmatprep.subr.bf16.mxu0 0
    %1291 = vmatpush1.bf16.msra.mxu0 %v345
    %1292 = vmatprep.subr.bf16.mxu0 0
    %1293 = vmatpush1.bf16.msra.mxu0 0
    %1294 = vmatprep.subr.bf16.mxu0 0
    %1295 = vmatpush1.bf16.msra.mxu0 0
    %1296 = vmatprep.subr.bf16.mxu0 0
    %1297 = vmatpush1.bf16.msra.mxu0 0
    %1298 = vmatprep.subr.bf16.mxu0 0
    %1299 = vmatpush1.bf16.msra.mxu0 0
    %1300 = vmatprep.subr.bf16.mxu0 0
    %1301 = vmatpush1.bf16.msra.mxu0 0
    %1302 = vmatprep.subr.bf16.mxu0 0
    %1303 = vmatpush1.bf16.msra.mxu0 0
    %1304 = vmatprep.subr.bf16.mxu0 0
    %1305 = vmatpush1.bf16.msra.mxu0 0
    %1306 = vmatprep.subr.bf16.mxu0 0
    %1307 = vmatpush1.bf16.msra.mxu0 0
    %1308 = vmatprep.subr.bf16.mxu0 0
    %1309 = vmatpush1.bf16.msra.mxu0 0
    %1310 = vmatprep.subr.bf16.mxu0 0
    %1311 = vmatpush1.bf16.msra.mxu0 0
    %1312 = vmatprep.subr.bf16.mxu0 0
    %1313 = vmatpush1.bf16.msra.mxu0 0
    %1314 = vmatprep.subr.bf16.mxu0 0
    %1315 = vmatpush1.bf16.msra.mxu0 0
    %1316 = vmatprep.subr.bf16.mxu0 0
    %1317 = vmatpush1.bf16.msra.mxu0 0
    %1318 = vmatprep.subr.bf16.mxu0 0
    %1319 = vmatpush1.bf16.msra.mxu0 0
    %1320 = vmatprep.mubr.bf16.mxu0 0
    %1321 = vmatmul.mubr.bf16.gmra.mrb[0].mxu0 %v1286
    %v1322 = vpop.f32.mrb[0].mxu0
    %v1323 = vadd.f32 0.0, %v1322
    %v1324 = vpop.f32.mrb[0].mxu0
    %v1325 = vpop.f32.mrb[0].mxu0
    %v1326 = vadd.f32 0.0, %v1325
    %v1327 = vpop.f32.mrb[0].mxu0
    %1328 = vdwg.mxu0
    %1330 = vrot.lane.b32.xlu0 %v1280, 64
    %v1331 = vpop.permute.xlu0 %1330
    %v1333 = vsel %vm244, %v1331, 0
    %1335 = vmatprep.subr.bf16.mxu0 0
    %1336 = vmatpush1.bf16.msra.mxu0 %v400
    %1337 = vmatprep.subr.bf16.mxu0 0
    %1338 = vmatpush1.bf16.msra.mxu0 %v401
    %1339 = vmatprep.subr.bf16.mxu0 0
    %1340 = vmatpush1.bf16.msra.mxu0 0
    %1341 = vmatprep.subr.bf16.mxu0 0
    %1342 = vmatpush1.bf16.msra.mxu0 0
    %1343 = vmatprep.subr.bf16.mxu0 0
    %1344 = vmatpush1.bf16.msra.mxu0 0
    %1345 = vmatprep.subr.bf16.mxu0 0
    %1346 = vmatpush1.bf16.msra.mxu0 0
    %1347 = vmatprep.subr.bf16.mxu0 0
    %1348 = vmatpush1.bf16.msra.mxu0 0
    %1349 = vmatprep.subr.bf16.mxu0 0
    %1350 = vmatpush1.bf16.msra.mxu0 0
    %1351 = vmatprep.subr.bf16.mxu0 0
    %1352 = vmatpush1.bf16.msra.mxu0 0
    %1353 = vmatprep.subr.bf16.mxu0 0
    %1354 = vmatpush1.bf16.msra.mxu0 0
    %1355 = vmatprep.subr.bf16.mxu0 0
    %1356 = vmatpush1.bf16.msra.mxu0 0
    %1357 = vmatprep.subr.bf16.mxu0 0
    %1358 = vmatpush1.bf16.msra.mxu0 0
    %1359 = vmatprep.subr.bf16.mxu0 0
    %1360 = vmatpush1.bf16.msra.mxu0 0
    %1361 = vmatprep.subr.bf16.mxu0 0
    %1362 = vmatpush1.bf16.msra.mxu0 0
    %1363 = vmatprep.subr.bf16.mxu0 0
    %1364 = vmatpush1.bf16.msra.mxu0 0
    %1365 = vmatprep.subr.bf16.mxu0 0
    %1366 = vmatpush1.bf16.msra.mxu0 0
    %1367 = vmatprep.mubr.bf16.mxu0 0
    %1368 = vmatmul.mubr.bf16.gmra.mrb[0].mxu0 %v1333
    %v1369 = vpop.f32.mrb[0].mxu0
    %v1370 = vadd.f32 %v1323, %v1369
    %v1371 = vpop.f32.mrb[0].mxu0
    %v1372 = vpop.f32.mrb[0].mxu0
    %v1373 = vadd.f32 %v1326, %v1372
    %v1374 = vpop.f32.mrb[0].mxu0
    %1375 = vdwg.mxu0
    %v1376 = vadd.f32 %v1370, %v228
    %v1377 = vadd.f32 %v1373, %v228
    %v1378 = vmul.f32 %v1376, 0.5
    %v1379 = vmul.f32 %v1377, 0.5
    %v1380 = vtanh.pop %v1378
    %v1381 = vtanh.pop %v1379
    %v1382 = vadd.f32 %v1380, 1.0
    %v1383 = vadd.f32 %v1381, 1.0
    %v1384 = vmul.f32 %v1382, 0.5
    %v1385 = vmul.f32 %v1383, 0.5
    %v1386 = vtanh.pop %v1376
    %v1387 = vtanh.pop %v1377
    %v1388 = vmul.f32 %v1384, %v1176
    %v1389 = vmul.f32 %v1385, %v1177
    %1392 = vrot.lane.b32.xlu0 %v1386, 32
    %v1393 = vpop.permute.xlu0 %1392
    %1394 = vrot.lane.b32.xlu0 %v1387, 32
    %v1395 = vpop.permute.xlu0 %1394
    %v1398 = vmul.f32 %v1384, %v1393
    %v1399 = vmul.f32 %v1385, %v1395
    %1402 = vrot.lane.b32.xlu0 %v1398, 32
    %v1403 = vpop.permute.xlu0 %1402
    %1404 = vrot.lane.b32.xlu0 %v1399, 32
    %v1405 = vpop.permute.xlu0 %1404
    %v1408 = vadd.f32 %v1388, %v1403
    %v1409 = vadd.f32 %v1389, %v1405
    %v1410 = vtanh.pop %v1408
    %v1411 = vtanh.pop %v1409
    %1414 = vrot.lane.b32.xlu0 %v1410, 32
    %v1415 = vpop.permute.xlu0 %1414
    %1416 = vrot.lane.b32.xlu0 %v1411, 32
    %v1417 = vpop.permute.xlu0 %1416
    %v1420 = vmul.f32 %v1384, %v1415
    %v1421 = vmul.f32 %v1385, %v1417
    %s1422 = scalar_lea.vmem [#allocation2], 80
    %v1423 = vld [vmem:[%s1422] sm:$0xff]
    %v1424 = vld [vmem:[%s1422 + $0x8] sm:$0xff]
    %1425 = vmatprep.subr.bf16.mxu0 0
    %1426 = vmatpush1.bf16.msra.mxu0 %v240
    %1427 = vmatprep.subr.bf16.mxu0 0
    %1428 = vmatpush1.bf16.msra.mxu0 %v241
    %1429 = vmatprep.subr.bf16.mxu0 0
    %1430 = vmatpush1.bf16.msra.mxu0 0
    %1431 = vmatprep.subr.bf16.mxu0 0
    %1432 = vmatpush1.bf16.msra.mxu0 0
    %1433 = vmatprep.subr.bf16.mxu0 0
    %1434 = vmatpush1.bf16.msra.mxu0 0
    %1435 = vmatprep.subr.bf16.mxu0 0
    %1436 = vmatpush1.bf16.msra.mxu0 0
    %1437 = vmatprep.subr.bf16.mxu0 0
    %1438 = vmatpush1.bf16.msra.mxu0 0
    %1439 = vmatprep.subr.bf16.mxu0 0
    %1440 = vmatpush1.bf16.msra.mxu0 0
    %1441 = vmatprep.subr.bf16.mxu0 0
    %1442 = vmatpush1.bf16.msra.mxu0 0
    %1443 = vmatprep.subr.bf16.mxu0 0
    %1444 = vmatpush1.bf16.msra.mxu0 0
    %1445 = vmatprep.subr.bf16.mxu0 0
    %1446 = vmatpush1.bf16.msra.mxu0 0
    %1447 = vmatprep.subr.bf16.mxu0 0
    %1448 = vmatpush1.bf16.msra.mxu0 0
    %1449 = vmatprep.subr.bf16.mxu0 0
    %1450 = vmatpush1.bf16.msra.mxu0 0
    %1451 = vmatprep.subr.bf16.mxu0 0
    %1452 = vmatpush1.bf16.msra.mxu0 0
    %1453 = vmatprep.subr.bf16.mxu0 0
    %1454 = vmatpush1.bf16.msra.mxu0 0
    %1455 = vmatprep.subr.bf16.mxu0 0
    %1456 = vmatpush1.bf16.msra.mxu0 0
    %1457 = vmatprep.mubr.bf16.mxu0 0
    %1458 = vmatmul.mubr.bf16.gmra.mrb[0].mxu0 %v1333
    %v1459 = vpop.f32.mrb[0].mxu0
    %v1460 = vadd.f32 0.0, %v1459
    %v1461 = vpop.f32.mrb[0].mxu0
    %v1462 = vpop.f32.mrb[0].mxu0
    %v1463 = vadd.f32 0.0, %v1462
    %v1464 = vpop.f32.mrb[0].mxu0
    %1465 = vdwg.mxu0
    %v1466 = vadd.f32 %v1423, %v1460
    %v1467 = vadd.f32 %v1424, %v1463
    %v1468 = vmul.f32 %v1466, 0.5
    %v1469 = vmul.f32 %v1467, 0.5
    %v1470 = vtanh.pop %v1468
    %v1471 = vtanh.pop %v1469
    %v1472 = vadd.f32 %v1470, 1.0
    %v1473 = vadd.f32 %v1471, 1.0
    %v1474 = vmul.f32 %v1472, 0.5
    %v1475 = vmul.f32 %v1473, 0.5
    %v1476 = vtanh.pop %v1466
    %v1477 = vtanh.pop %v1467
    %v1478 = vmul.f32 %v1474, %v1266
    %v1479 = vmul.f32 %v1475, %v1267
    %1482 = vrot.lane.b32.xlu0 %v1476, 32
    %v1483 = vpop.permute.xlu0 %1482
    %1484 = vrot.lane.b32.xlu0 %v1477, 32
    %v1485 = vpop.permute.xlu0 %1484
    %v1488 = vmul.f32 %v1474, %v1483
    %v1489 = vmul.f32 %v1475, %v1485
    %1492 = vrot.lane.b32.xlu0 %v1488, 32
    %v1493 = vpop.permute.xlu0 %1492
    %1494 = vrot.lane.b32.xlu0 %v1489, 32
    %v1495 = vpop.permute.xlu0 %1494
    %v1498 = vadd.f32 %v1478, %v1493
    %v1499 = vadd.f32 %v1479, %v1495
    %v1500 = vtanh.pop %v1498
    %v1501 = vtanh.pop %v1499
    %1504 = vrot.lane.b32.xlu0 %v1500, 32
    %v1505 = vpop.permute.xlu0 %1504
    %1506 = vrot.lane.b32.xlu0 %v1501, 32
    %v1507 = vpop.permute.xlu0 %1506
    %v1510 = vmul.f32 %v1474, %v1505
    %v1511 = vmul.f32 %v1475, %v1507
    %v1512 = vpack.c.bf16 %v1511, %v1510
    %v1513 = vpack.c.bf16 %v1421, %v1420
    %1515 = vrot.lane.b32.xlu0 %v1513, 64
    %v1516 = vpop.permute.xlu0 %1515
    %v1518 = vsel %vm244, %v1516, 0
    %1520 = vmatprep.subr.bf16.mxu0 0
    %1521 = vmatpush1.bf16.msra.mxu0 %v344
    %1522 = vmatprep.subr.bf16.mxu0 0
    %1523 = vmatpush1.bf16.msra.mxu0 %v345
    %1524 = vmatprep.subr.bf16.mxu0 0
    %1525 = vmatpush1.bf16.msra.mxu0 0
    %1526 = vmatprep.subr.bf16.mxu0 0
    %1527 = vmatpush1.bf16.msra.mxu0 0
    %1528 = vmatprep.subr.bf16.mxu0 0
    %1529 = vmatpush1.bf16.msra.mxu0 0
    %1530 = vmatprep.subr.bf16.mxu0 0
    %1531 = vmatpush1.bf16.msra.mxu0 0
    %1532 = vmatprep.subr.bf16.mxu0 0
    %1533 = vmatpush1.bf16.msra.mxu0 0
    %1534 = vmatprep.subr.bf16.mxu0 0
    %1535 = vmatpush1.bf16.msra.mxu0 0
    %1536 = vmatprep.subr.bf16.mxu0 0
    %1537 = vmatpush1.bf16.msra.mxu0 0
    %1538 = vmatprep.subr.bf16.mxu0 0
    %1539 = vmatpush1.bf16.msra.mxu0 0
    %1540 = vmatprep.subr.bf16.mxu0 0
    %1541 = vmatpush1.bf16.msra.mxu0 0
    %1542 = vmatprep.subr.bf16.mxu0 0
    %1543 = vmatpush1.bf16.msra.mxu0 0
    %1544 = vmatprep.subr.bf16.mxu0 0
    %1545 = vmatpush1.bf16.msra.mxu0 0
    %1546 = vmatprep.subr.bf16.mxu0 0
    %1547 = vmatpush1.bf16.msra.mxu0 0
    %1548 = vmatprep.subr.bf16.mxu0 0
    %1549 = vmatpush1.bf16.msra.mxu0 0
    %1550 = vmatprep.subr.bf16.mxu0 0
    %1551 = vmatpush1.bf16.msra.mxu0 0
    %1552 = vmatprep.mubr.bf16.mxu0 0
    %1553 = vmatmul.mubr.bf16.gmra.mrb[0].mxu0 %v1518
    %v1554 = vpop.f32.mrb[0].mxu0
    %v1555 = vadd.f32 0.0, %v1554
    %v1556 = vpop.f32.mrb[0].mxu0
    %v1557 = vpop.f32.mrb[0].mxu0
    %v1558 = vadd.f32 0.0, %v1557
    %v1559 = vpop.f32.mrb[0].mxu0
    %1560 = vdwg.mxu0
    %1562 = vrot.lane.b32.xlu0 %v1512, 64
    %v1563 = vpop.permute.xlu0 %1562
    %v1565 = vsel %vm244, %v1563, 0
    %1567 = vmatprep.subr.bf16.mxu0 0
    %1568 = vmatpush1.bf16.msra.mxu0 %v400
    %1569 = vmatprep.subr.bf16.mxu0 0
    %1570 = vmatpush1.bf16.msra.mxu0 %v401
    %1571 = vmatprep.subr.bf16.mxu0 0
    %1572 = vmatpush1.bf16.msra.mxu0 0
    %1573 = vmatprep.subr.bf16.mxu0 0
    %1574 = vmatpush1.bf16.msra.mxu0 0
    %1575 = vmatprep.subr.bf16.mxu0 0
    %1576 = vmatpush1.bf16.msra.mxu0 0
    %1577 = vmatprep.subr.bf16.mxu0 0
    %1578 = vmatpush1.bf16.msra.mxu0 0
    %1579 = vmatprep.subr.bf16.mxu0 0
    %1580 = vmatpush1.bf16.msra.mxu0 0
    %1581 = vmatprep.subr.bf16.mxu0 0
    %1582 = vmatpush1.bf16.msra.mxu0 0
    %1583 = vmatprep.subr.bf16.mxu0 0
    %1584 = vmatpush1.bf16.msra.mxu0 0
    %1585 = vmatprep.subr.bf16.mxu0 0
    %1586 = vmatpush1.bf16.msra.mxu0 0
    %1587 = vmatprep.subr.bf16.mxu0 0
    %1588 = vmatpush1.bf16.msra.mxu0 0
    %1589 = vmatprep.subr.bf16.mxu0 0
    %1590 = vmatpush1.bf16.msra.mxu0 0
    %1591 = vmatprep.subr.bf16.mxu0 0
    %1592 = vmatpush1.bf16.msra.mxu0 0
    %1593 = vmatprep.subr.bf16.mxu0 0
    %1594 = vmatpush1.bf16.msra.mxu0 0
    %1595 = vmatprep.subr.bf16.mxu0 0
    %1596 = vmatpush1.bf16.msra.mxu0 0
    %1597 = vmatprep.subr.bf16.mxu0 0
    %1598 = vmatpush1.bf16.msra.mxu0 0
    %1599 = vmatprep.mubr.bf16.mxu0 0
    %1600 = vmatmul.mubr.bf16.gmra.mrb[0].mxu0 %v1565
    %v1601 = vpop.f32.mrb[0].mxu0
    %v1602 = vadd.f32 %v1555, %v1601
    %v1603 = vpop.f32.mrb[0].mxu0
    %v1604 = vpop.f32.mrb[0].mxu0
    %v1605 = vadd.f32 %v1558, %v1604
    %v1606 = vpop.f32.mrb[0].mxu0
    %1607 = vdwg.mxu0
    %v1608 = vadd.f32 %v1602, %v228
    %v1609 = vadd.f32 %v1605, %v228
    %v1610 = vmul.f32 %v1608, 0.5
    %v1611 = vmul.f32 %v1609, 0.5
    %v1612 = vtanh.pop %v1610
    %v1613 = vtanh.pop %v1611
    %v1614 = vadd.f32 %v1612, 1.0
    %v1615 = vadd.f32 %v1613, 1.0
    %v1616 = vmul.f32 %v1614, 0.5
    %v1617 = vmul.f32 %v1615, 0.5
    %v1618 = vtanh.pop %v1608
    %v1619 = vtanh.pop %v1609
    %v1620 = vmul.f32 %v1616, %v1408
    %v1621 = vmul.f32 %v1617, %v1409
    %1624 = vrot.lane.b32.xlu0 %v1618, 32
    %v1625 = vpop.permute.xlu0 %1624
    %1626 = vrot.lane.b32.xlu0 %v1619, 32
    %v1627 = vpop.permute.xlu0 %1626
    %v1630 = vmul.f32 %v1616, %v1625
    %v1631 = vmul.f32 %v1617, %v1627
    %1634 = vrot.lane.b32.xlu0 %v1630, 32
    %v1635 = vpop.permute.xlu0 %1634
    %1636 = vrot.lane.b32.xlu0 %v1631, 32
    %v1637 = vpop.permute.xlu0 %1636
    %v1640 = vadd.f32 %v1620, %v1635
    %v1641 = vadd.f32 %v1621, %v1637
    %v1642 = vtanh.pop %v1640
    %v1643 = vtanh.pop %v1641
    %1646 = vrot.lane.b32.xlu0 %v1642, 32
    %v1647 = vpop.permute.xlu0 %1646
    %1648 = vrot.lane.b32.xlu0 %v1643, 32
    %v1649 = vpop.permute.xlu0 %1648
    %v1652 = vmul.f32 %v1616, %v1647
    %v1653 = vmul.f32 %v1617, %v1649
    %s1654 = scalar_lea.vmem [#allocation2], 96
    %v1655 = vld [vmem:[%s1654] sm:$0xff]
    %v1656 = vld [vmem:[%s1654 + $0x8] sm:$0xff]
    %1657 = vmatprep.subr.bf16.mxu0 0
    %1658 = vmatpush1.bf16.msra.mxu0 %v240
    %1659 = vmatprep.subr.bf16.mxu0 0
    %1660 = vmatpush1.bf16.msra.mxu0 %v241
    %1661 = vmatprep.subr.bf16.mxu0 0
    %1662 = vmatpush1.bf16.msra.mxu0 0
    %1663 = vmatprep.subr.bf16.mxu0 0
    %1664 = vmatpush1.bf16.msra.mxu0 0
    %1665 = vmatprep.subr.bf16.mxu0 0
    %1666 = vmatpush1.bf16.msra.mxu0 0
    %1667 = vmatprep.subr.bf16.mxu0 0
    %1668 = vmatpush1.bf16.msra.mxu0 0
    %1669 = vmatprep.subr.bf16.mxu0 0
    %1670 = vmatpush1.bf16.msra.mxu0 0
    %1671 = vmatprep.subr.bf16.mxu0 0
    %1672 = vmatpush1.bf16.msra.mxu0 0
    %1673 = vmatprep.subr.bf16.mxu0 0
    %1674 = vmatpush1.bf16.msra.mxu0 0
    %1675 = vmatprep.subr.bf16.mxu0 0
    %1676 = vmatpush1.bf16.msra.mxu0 0
    %1677 = vmatprep.subr.bf16.mxu0 0
    %1678 = vmatpush1.bf16.msra.mxu0 0
    %1679 = vmatprep.subr.bf16.mxu0 0
    %1680 = vmatpush1.bf16.msra.mxu0 0
    %1681 = vmatprep.subr.bf16.mxu0 0
    %1682 = vmatpush1.bf16.msra.mxu0 0
    %1683 = vmatprep.subr.bf16.mxu0 0
    %1684 = vmatpush1.bf16.msra.mxu0 0
    %1685 = vmatprep.subr.bf16.mxu0 0
    %1686 = vmatpush1.bf16.msra.mxu0 0
    %1687 = vmatprep.subr.bf16.mxu0 0
    %1688 = vmatpush1.bf16.msra.mxu0 0
    %1689 = vmatprep.mubr.bf16.mxu0 0
    %1690 = vmatmul.mubr.bf16.gmra.mrb[0].mxu0 %v1565
    %v1691 = vpop.f32.mrb[0].mxu0
    %v1692 = vadd.f32 0.0, %v1691
    %v1693 = vpop.f32.mrb[0].mxu0
    %v1694 = vpop.f32.mrb[0].mxu0
    %v1695 = vadd.f32 0.0, %v1694
    %v1696 = vpop.f32.mrb[0].mxu0
    %1697 = vdwg.mxu0
    %v1698 = vadd.f32 %v1655, %v1692
    %v1699 = vadd.f32 %v1656, %v1695
    %v1700 = vmul.f32 %v1698, 0.5
    %v1701 = vmul.f32 %v1699, 0.5
    %v1702 = vtanh.pop %v1700
    %v1703 = vtanh.pop %v1701
    %v1704 = vadd.f32 %v1702, 1.0
    %v1705 = vadd.f32 %v1703, 1.0
    %v1706 = vmul.f32 %v1704, 0.5
    %v1707 = vmul.f32 %v1705, 0.5
    %v1708 = vtanh.pop %v1698
    %v1709 = vtanh.pop %v1699
    %v1710 = vmul.f32 %v1706, %v1498
    %v1711 = vmul.f32 %v1707, %v1499
    %1714 = vrot.lane.b32.xlu0 %v1708, 32
    %v1715 = vpop.permute.xlu0 %1714
    %1716 = vrot.lane.b32.xlu0 %v1709, 32
    %v1717 = vpop.permute.xlu0 %1716
    %v1720 = vmul.f32 %v1706, %v1715
    %v1721 = vmul.f32 %v1707, %v1717
    %1724 = vrot.lane.b32.xlu0 %v1720, 32
    %v1725 = vpop.permute.xlu0 %1724
    %1726 = vrot.lane.b32.xlu0 %v1721, 32
    %v1727 = vpop.permute.xlu0 %1726
    %v1730 = vadd.f32 %v1710, %v1725
    %v1731 = vadd.f32 %v1711, %v1727
    %v1732 = vtanh.pop %v1730
    %v1733 = vtanh.pop %v1731
    %1736 = vrot.lane.b32.xlu0 %v1732, 32
    %v1737 = vpop.permute.xlu0 %1736
    %1738 = vrot.lane.b32.xlu0 %v1733, 32
    %v1739 = vpop.permute.xlu0 %1738
    %v1742 = vmul.f32 %v1706, %v1737
    %v1743 = vmul.f32 %v1707, %v1739
    %v1744 = vpack.c.bf16 %v1743, %v1742
    %v1745 = vpack.c.bf16 %v1653, %v1652
    %1747 = vrot.lane.b32.xlu0 %v1745, 64
    %v1748 = vpop.permute.xlu0 %1747
    %v1750 = vsel %vm244, %v1748, 0
    %1752 = vmatprep.subr.bf16.mxu0 0
    %1753 = vmatpush1.bf16.msra.mxu0 %v344
    %1754 = vmatprep.subr.bf16.mxu0 0
    %1755 = vmatpush1.bf16.msra.mxu0 %v345
    %1756 = vmatprep.subr.bf16.mxu0 0
    %1757 = vmatpush1.bf16.msra.mxu0 0
    %1758 = vmatprep.subr.bf16.mxu0 0
    %1759 = vmatpush1.bf16.msra.mxu0 0
    %1760 = vmatprep.subr.bf16.mxu0 0
    %1761 = vmatpush1.bf16.msra.mxu0 0
    %1762 = vmatprep.subr.bf16.mxu0 0
    %1763 = vmatpush1.bf16.msra.mxu0 0
    %1764 = vmatprep.subr.bf16.mxu0 0
    %1765 = vmatpush1.bf16.msra.mxu0 0
    %1766 = vmatprep.subr.bf16.mxu0 0
    %1767 = vmatpush1.bf16.msra.mxu0 0
    %1768 = vmatprep.subr.bf16.mxu0 0
    %1769 = vmatpush1.bf16.msra.mxu0 0
    %1770 = vmatprep.subr.bf16.mxu0 0
    %1771 = vmatpush1.bf16.msra.mxu0 0
    %1772 = vmatprep.subr.bf16.mxu0 0
    %1773 = vmatpush1.bf16.msra.mxu0 0
    %1774 = vmatprep.subr.bf16.mxu0 0
    %1775 = vmatpush1.bf16.msra.mxu0 0
    %1776 = vmatprep.subr.bf16.mxu0 0
    %1777 = vmatpush1.bf16.msra.mxu0 0
    %1778 = vmatprep.subr.bf16.mxu0 0
    %1779 = vmatpush1.bf16.msra.mxu0 0
    %1780 = vmatprep.subr.bf16.mxu0 0
    %1781 = vmatpush1.bf16.msra.mxu0 0
    %1782 = vmatprep.subr.bf16.mxu0 0
    %1783 = vmatpush1.bf16.msra.mxu0 0
    %1784 = vmatprep.mubr.bf16.mxu0 0
    %1785 = vmatmul.mubr.bf16.gmra.mrb[0].mxu0 %v1750
    %v1786 = vpop.f32.mrb[0].mxu0
    %v1787 = vadd.f32 0.0, %v1786
    %v1788 = vpop.f32.mrb[0].mxu0
    %v1789 = vpop.f32.mrb[0].mxu0
    %v1790 = vadd.f32 0.0, %v1789
    %v1791 = vpop.f32.mrb[0].mxu0
    %1792 = vdwg.mxu0
    %1794 = vrot.lane.b32.xlu0 %v1744, 64
    %v1795 = vpop.permute.xlu0 %1794
    %v1797 = vsel %vm244, %v1795, 0
    %1799 = vmatprep.subr.bf16.mxu0 0
    %1800 = vmatpush1.bf16.msra.mxu0 %v400
    %1801 = vmatprep.subr.bf16.mxu0 0
    %1802 = vmatpush1.bf16.msra.mxu0 %v401
    %1803 = vmatprep.subr.bf16.mxu0 0
    %1804 = vmatpush1.bf16.msra.mxu0 0
    %1805 = vmatprep.subr.bf16.mxu0 0
    %1806 = vmatpush1.bf16.msra.mxu0 0
    %1807 = vmatprep.subr.bf16.mxu0 0
    %1808 = vmatpush1.bf16.msra.mxu0 0
    %1809 = vmatprep.subr.bf16.mxu0 0
    %1810 = vmatpush1.bf16.msra.mxu0 0
    %1811 = vmatprep.subr.bf16.mxu0 0
    %1812 = vmatpush1.bf16.msra.mxu0 0
    %1813 = vmatprep.subr.bf16.mxu0 0
    %1814 = vmatpush1.bf16.msra.mxu0 0
    %1815 = vmatprep.subr.bf16.mxu0 0
    %1816 = vmatpush1.bf16.msra.mxu0 0
    %1817 = vmatprep.subr.bf16.mxu0 0
    %1818 = vmatpush1.bf16.msra.mxu0 0
    %1819 = vmatprep.subr.bf16.mxu0 0
    %1820 = vmatpush1.bf16.msra.mxu0 0
    %1821 = vmatprep.subr.bf16.mxu0 0
    %1822 = vmatpush1.bf16.msra.mxu0 0
    %1823 = vmatprep.subr.bf16.mxu0 0
    %1824 = vmatpush1.bf16.msra.mxu0 0
    %1825 = vmatprep.subr.bf16.mxu0 0
    %1826 = vmatpush1.bf16.msra.mxu0 0
    %1827 = vmatprep.subr.bf16.mxu0 0
    %1828 = vmatpush1.bf16.msra.mxu0 0
    %1829 = vmatprep.subr.bf16.mxu0 0
    %1830 = vmatpush1.bf16.msra.mxu0 0
    %1831 = vmatprep.mubr.bf16.mxu0 0
    %1832 = vmatmul.mubr.bf16.gmra.mrb[0].mxu0 %v1797
    %v1833 = vpop.f32.mrb[0].mxu0
    %v1834 = vadd.f32 %v1787, %v1833
    %v1835 = vpop.f32.mrb[0].mxu0
    %v1836 = vpop.f32.mrb[0].mxu0
    %v1837 = vadd.f32 %v1790, %v1836
    %v1838 = vpop.f32.mrb[0].mxu0
    %1839 = vdwg.mxu0
    %v1840 = vadd.f32 %v1834, %v228
    %v1841 = vadd.f32 %v1837, %v228
    %v1842 = vmul.f32 %v1840, 0.5
    %v1843 = vmul.f32 %v1841, 0.5
    %v1844 = vtanh.pop %v1842
    %v1845 = vtanh.pop %v1843
    %v1846 = vadd.f32 %v1844, 1.0
    %v1847 = vadd.f32 %v1845, 1.0
    %v1848 = vmul.f32 %v1846, 0.5
    %v1849 = vmul.f32 %v1847, 0.5
    %v1850 = vtanh.pop %v1840
    %v1851 = vtanh.pop %v1841
    %v1852 = vmul.f32 %v1848, %v1640
    %v1853 = vmul.f32 %v1849, %v1641
    %1856 = vrot.lane.b32.xlu0 %v1850, 32
    %v1857 = vpop.permute.xlu0 %1856
    %1858 = vrot.lane.b32.xlu0 %v1851, 32
    %v1859 = vpop.permute.xlu0 %1858
    %v1862 = vmul.f32 %v1848, %v1857
    %v1863 = vmul.f32 %v1849, %v1859
    %1866 = vrot.lane.b32.xlu0 %v1862, 32
    %v1867 = vpop.permute.xlu0 %1866
    %1868 = vrot.lane.b32.xlu0 %v1863, 32
    %v1869 = vpop.permute.xlu0 %1868
    %v1872 = vadd.f32 %v1852, %v1867
    %v1873 = vadd.f32 %v1853, %v1869
    %v1874 = vtanh.pop %v1872
    %v1875 = vtanh.pop %v1873
    %1878 = vrot.lane.b32.xlu0 %v1874, 32
    %v1879 = vpop.permute.xlu0 %1878
    %1880 = vrot.lane.b32.xlu0 %v1875, 32
    %v1881 = vpop.permute.xlu0 %1880
    %v1884 = vmul.f32 %v1848, %v1879
    %v1885 = vmul.f32 %v1849, %v1881
    %s1886 = scalar_lea.vmem [#allocation2], 112
    %v1887 = vld [vmem:[%s1886] sm:$0xff]
    %v1888 = vld [vmem:[%s1886 + $0x8] sm:$0xff]
    %1889 = vmatprep.subr.bf16.mxu0 0
    %1890 = vmatpush1.bf16.msra.mxu0 %v240
    %1891 = vmatprep.subr.bf16.mxu0 0
    %1892 = vmatpush1.bf16.msra.mxu0 %v241
    %1893 = vmatprep.subr.bf16.mxu0 0
    %1894 = vmatpush1.bf16.msra.mxu0 0
    %1895 = vmatprep.subr.bf16.mxu0 0
    %1896 = vmatpush1.bf16.msra.mxu0 0
    %1897 = vmatprep.subr.bf16.mxu0 0
    %1898 = vmatpush1.bf16.msra.mxu0 0
    %1899 = vmatprep.subr.bf16.mxu0 0
    %1900 = vmatpush1.bf16.msra.mxu0 0
    %1901 = vmatprep.subr.bf16.mxu0 0
    %1902 = vmatpush1.bf16.msra.mxu0 0
    %1903 = vmatprep.subr.bf16.mxu0 0
    %1904 = vmatpush1.bf16.msra.mxu0 0
    %1905 = vmatprep.subr.bf16.mxu0 0
    %1906 = vmatpush1.bf16.msra.mxu0 0
    %1907 = vmatprep.subr.bf16.mxu0 0
    %1908 = vmatpush1.bf16.msra.mxu0 0
    %1909 = vmatprep.subr.bf16.mxu0 0
    %1910 = vmatpush1.bf16.msra.mxu0 0
    %1911 = vmatprep.subr.bf16.mxu0 0
    %1912 = vmatpush1.bf16.msra.mxu0 0
    %1913 = vmatprep.subr.bf16.mxu0 0
    %1914 = vmatpush1.bf16.msra.mxu0 0
    %1915 = vmatprep.subr.bf16.mxu0 0
    %1916 = vmatpush1.bf16.msra.mxu0 0
    %1917 = vmatprep.subr.bf16.mxu0 0
    %1918 = vmatpush1.bf16.msra.mxu0 0
    %1919 = vmatprep.subr.bf16.mxu0 0
    %1920 = vmatpush1.bf16.msra.mxu0 0
    %1921 = vmatprep.mubr.bf16.mxu0 0
    %1922 = vmatmul.mubr.bf16.gmra.mrb[0].mxu0 %v1797
    %v1923 = vpop.f32.mrb[0].mxu0
    %v1924 = vadd.f32 0.0, %v1923
    %v1925 = vpop.f32.mrb[0].mxu0
    %v1926 = vpop.f32.mrb[0].mxu0
    %v1927 = vadd.f32 0.0, %v1926
    %v1928 = vpop.f32.mrb[0].mxu0
    %1929 = vdwg.mxu0
    %v1930 = vadd.f32 %v1887, %v1924
    %v1931 = vadd.f32 %v1888, %v1927
    %v1932 = vmul.f32 %v1930, 0.5
    %v1933 = vmul.f32 %v1931, 0.5
    %v1934 = vtanh.pop %v1932
    %v1935 = vtanh.pop %v1933
    %v1936 = vadd.f32 %v1934, 1.0
    %v1937 = vadd.f32 %v1935, 1.0
    %v1938 = vmul.f32 %v1936, 0.5
    %v1939 = vmul.f32 %v1937, 0.5
    %v1940 = vtanh.pop %v1930
    %v1941 = vtanh.pop %v1931
    %v1942 = vmul.f32 %v1938, %v1730
    %v1943 = vmul.f32 %v1939, %v1731
    %1946 = vrot.lane.b32.xlu0 %v1940, 32
    %v1947 = vpop.permute.xlu0 %1946
    %1948 = vrot.lane.b32.xlu0 %v1941, 32
    %v1949 = vpop.permute.xlu0 %1948
    %v1952 = vmul.f32 %v1938, %v1947
    %v1953 = vmul.f32 %v1939, %v1949
    %1956 = vrot.lane.b32.xlu0 %v1952, 32
    %v1957 = vpop.permute.xlu0 %1956
    %1958 = vrot.lane.b32.xlu0 %v1953, 32
    %v1959 = vpop.permute.xlu0 %1958
    %v1962 = vadd.f32 %v1942, %v1957
    %v1963 = vadd.f32 %v1943, %v1959
    %v1964 = vtanh.pop %v1962
    %v1965 = vtanh.pop %v1963
    %1968 = vrot.lane.b32.xlu0 %v1964, 32
    %v1969 = vpop.permute.xlu0 %1968
    %1970 = vrot.lane.b32.xlu0 %v1965, 32
    %v1971 = vpop.permute.xlu0 %1970
    %v1974 = vmul.f32 %v1938, %v1969
    %v1975 = vmul.f32 %v1939, %v1971
    %v1976 = vpack.c.bf16 %v1975, %v1974
    %v1977 = vpack.c.bf16 %v1885, %v1884
    %1979 = vrot.lane.b32.xlu0 %v1977, 64
    %v1980 = vpop.permute.xlu0 %1979
    %v1982 = vsel %vm244, %v1980, 0
    %1984 = vmatprep.subr.bf16.mxu0 0
    %1985 = vmatpush1.bf16.msra.mxu0 %v344
    %1986 = vmatprep.subr.bf16.mxu0 0
    %1987 = vmatpush1.bf16.msra.mxu0 %v345
    %1988 = vmatprep.subr.bf16.mxu0 0
    %1989 = vmatpush1.bf16.msra.mxu0 0
    %1990 = vmatprep.subr.bf16.mxu0 0
    %1991 = vmatpush1.bf16.msra.mxu0 0
    %1992 = vmatprep.subr.bf16.mxu0 0
    %1993 = vmatpush1.bf16.msra.mxu0 0
    %1994 = vmatprep.subr.bf16.mxu0 0
    %1995 = vmatpush1.bf16.msra.mxu0 0
    %1996 = vmatprep.subr.bf16.mxu0 0
    %1997 = vmatpush1.bf16.msra.mxu0 0
    %1998 = vmatprep.subr.bf16.mxu0 0
    %1999 = vmatpush1.bf16.msra.mxu0 0
    %2000 = vmatprep.subr.bf16.mxu0 0
    %2001 = vmatpush1.bf16.msra.mxu0 0
    %2002 = vmatprep.subr.bf16.mxu0 0
    %2003 = vmatpush1.bf16.msra.mxu0 0
    %2004 = vmatprep.subr.bf16.mxu0 0
    %2005 = vmatpush1.bf16.msra.mxu0 0
    %2006 = vmatprep.subr.bf16.mxu0 0
    %2007 = vmatpush1.bf16.msra.mxu0 0
    %2008 = vmatprep.subr.bf16.mxu0 0
    %2009 = vmatpush1.bf16.msra.mxu0 0
    %2010 = vmatprep.subr.bf16.mxu0 0
    %2011 = vmatpush1.bf16.msra.mxu0 0
    %2012 = vmatprep.subr.bf16.mxu0 0
    %2013 = vmatpush1.bf16.msra.mxu0 0
    %2014 = vmatprep.subr.bf16.mxu0 0
    %2015 = vmatpush1.bf16.msra.mxu0 0
    %2016 = vmatprep.mubr.bf16.mxu0 0
    %2017 = vmatmul.mubr.bf16.gmra.mrb[0].mxu0 %v1982
    %v2018 = vpop.f32.mrb[0].mxu0
    %v2019 = vadd.f32 0.0, %v2018
    %v2020 = vpop.f32.mrb[0].mxu0
    %v2021 = vpop.f32.mrb[0].mxu0
    %v2022 = vadd.f32 0.0, %v2021
    %v2023 = vpop.f32.mrb[0].mxu0
    %2024 = vdwg.mxu0
    %2026 = vrot.lane.b32.xlu0 %v1976, 64
    %v2027 = vpop.permute.xlu0 %2026
    %v2029 = vsel %vm244, %v2027, 0
    %2031 = vmatprep.subr.bf16.mxu0 0
    %2032 = vmatpush1.bf16.msra.mxu0 %v400
    %2033 = vmatprep.subr.bf16.mxu0 0
    %2034 = vmatpush1.bf16.msra.mxu0 %v401
    %2035 = vmatprep.subr.bf16.mxu0 0
    %2036 = vmatpush1.bf16.msra.mxu0 0
    %2037 = vmatprep.subr.bf16.mxu0 0
    %2038 = vmatpush1.bf16.msra.mxu0 0
    %2039 = vmatprep.subr.bf16.mxu0 0
    %2040 = vmatpush1.bf16.msra.mxu0 0
    %2041 = vmatprep.subr.bf16.mxu0 0
    %2042 = vmatpush1.bf16.msra.mxu0 0
    %2043 = vmatprep.subr.bf16.mxu0 0
    %2044 = vmatpush1.bf16.msra.mxu0 0
    %2045 = vmatprep.subr.bf16.mxu0 0
    %2046 = vmatpush1.bf16.msra.mxu0 0
    %2047 = vmatprep.subr.bf16.mxu0 0
    %2048 = vmatpush1.bf16.msra.mxu0 0
    %2049 = vmatprep.subr.bf16.mxu0 0
    %2050 = vmatpush1.bf16.msra.mxu0 0
    %2051 = vmatprep.subr.bf16.mxu0 0
    %2052 = vmatpush1.bf16.msra.mxu0 0
    %2053 = vmatprep.subr.bf16.mxu0 0
    %2054 = vmatpush1.bf16.msra.mxu0 0
    %2055 = vmatprep.subr.bf16.mxu0 0
    %2056 = vmatpush1.bf16.msra.mxu0 0
    %2057 = vmatprep.subr.bf16.mxu0 0
    %2058 = vmatpush1.bf16.msra.mxu0 0
    %2059 = vmatprep.subr.bf16.mxu0 0
    %2060 = vmatpush1.bf16.msra.mxu0 0
    %2061 = vmatprep.subr.bf16.mxu0 0
    %2062 = vmatpush1.bf16.msra.mxu0 0
    %2063 = vmatprep.mubr.bf16.mxu0 0
    %2064 = vmatmul.mubr.bf16.gmra.mrb[0].mxu0 %v2029
    %v2065 = vpop.f32.mrb[0].mxu0
    %v2066 = vadd.f32 %v2019, %v2065
    %v2067 = vpop.f32.mrb[0].mxu0
    %v2068 = vpop.f32.mrb[0].mxu0
    %v2069 = vadd.f32 %v2022, %v2068
    %v2070 = vpop.f32.mrb[0].mxu0
    %2071 = vdwg.mxu0
    %v2072 = vadd.f32 %v2066, %v228
    %v2073 = vadd.f32 %v2069, %v228
    %v2074 = vmul.f32 %v2072, 0.5
    %v2075 = vmul.f32 %v2073, 0.5
    %v2076 = vtanh.pop %v2074
    %v2077 = vtanh.pop %v2075
    %v2078 = vadd.f32 %v2076, 1.0
    %v2079 = vadd.f32 %v2077, 1.0
    %v2080 = vmul.f32 %v2078, 0.5
    %v2081 = vmul.f32 %v2079, 0.5
    %v2082 = vtanh.pop %v2072
    %v2083 = vtanh.pop %v2073
    %v2084 = vmul.f32 %v2080, %v1872
    %v2085 = vmul.f32 %v2081, %v1873
    %2088 = vrot.lane.b32.xlu0 %v2082, 32
    %v2089 = vpop.permute.xlu0 %2088
    %2090 = vrot.lane.b32.xlu0 %v2083, 32
    %v2091 = vpop.permute.xlu0 %2090
    %v2094 = vmul.f32 %v2080, %v2089
    %v2095 = vmul.f32 %v2081, %v2091
    %2098 = vrot.lane.b32.xlu0 %v2094, 32
    %v2099 = vpop.permute.xlu0 %2098
    %2100 = vrot.lane.b32.xlu0 %v2095, 32
    %v2101 = vpop.permute.xlu0 %2100
    %v2104 = vadd.f32 %v2084, %v2099
    %v2105 = vadd.f32 %v2085, %v2101
    %v2106 = vtanh.pop %v2104
    %v2107 = vtanh.pop %v2105
    %2110 = vrot.lane.b32.xlu0 %v2106, 32
    %v2111 = vpop.permute.xlu0 %2110
    %2112 = vrot.lane.b32.xlu0 %v2107, 32
    %v2113 = vpop.permute.xlu0 %2112
    %v2116 = vmul.f32 %v2080, %v2111
    %v2117 = vmul.f32 %v2081, %v2113
    %v2118 = vpack.c.bf16 %v2117, %v2116
    %v2119 = vld [vmem:[%s7] sm:$0xf]
    %v2120 = vld [vmem:[%s7 + $0x4] sm:$0xf]
    %v2121 = vld [vmem:[%s7 + $0x8] sm:$0xf]
    %v2122 = vld [vmem:[%s7 + $0xc] sm:$0xf]
    %v2123 = vld [vmem:[%s8] sm:$0x1]
    %v2125 = vlaneseq
    %v2126 = vshrl.u32 %v2125, 7
    %v2127 = vsub.s32 0, %v2126
    %v2128 = vrot.slane %v2123, %v2127
    %2131 = vrot.lane.b32.xlu0 %v2118, 64
    %v2132 = vpop.permute.xlu0 %2131
    %v2137 = vunpack.c.l.b16 %v2119
    %v2138 = vunpack.c.l.b16 %v2120
    %v2139 = vunpack.c.l.b16 %v2121
    %v2140 = vunpack.c.l.b16 %v2122
    %v2141 = vpack.c.b16 %v2138, %v2137
    %v2142 = vpack.c.b16 %v2140, %v2139
    %v2146 = vsel %vm244, %v2132, 0
    %2148 = vmatprep.subr.bf16.mxu0 0
    %2149 = vmatpush1.bf16.msra.mxu0 %v2141
    %2150 = vmatprep.subr.bf16.mxu0 0
    %2151 = vmatpush1.bf16.msra.mxu0 %v2142
    %2152 = vmatprep.subr.bf16.mxu0 0
    %2153 = vmatpush1.bf16.msra.mxu0 0
    %2154 = vmatprep.subr.bf16.mxu0 0
    %2155 = vmatpush1.bf16.msra.mxu0 0
    %2156 = vmatprep.subr.bf16.mxu0 0
    %2157 = vmatpush1.bf16.msra.mxu0 0
    %2158 = vmatprep.subr.bf16.mxu0 0
    %2159 = vmatpush1.bf16.msra.mxu0 0
    %2160 = vmatprep.subr.bf16.mxu0 0
    %2161 = vmatpush1.bf16.msra.mxu0 0
    %2162 = vmatprep.subr.bf16.mxu0 0
    %2163 = vmatpush1.bf16.msra.mxu0 0
    %2164 = vmatprep.subr.bf16.mxu0 0
    %2165 = vmatpush1.bf16.msra.mxu0 0
    %2166 = vmatprep.subr.bf16.mxu0 0
    %2167 = vmatpush1.bf16.msra.mxu0 0
    %2168 = vmatprep.subr.bf16.mxu0 0
    %2169 = vmatpush1.bf16.msra.mxu0 0
    %2170 = vmatprep.subr.bf16.mxu0 0
    %2171 = vmatpush1.bf16.msra.mxu0 0
    %2172 = vmatprep.subr.bf16.mxu0 0
    %2173 = vmatpush1.bf16.msra.mxu0 0
    %2174 = vmatprep.subr.bf16.mxu0 0
    %2175 = vmatpush1.bf16.msra.mxu0 0
    %2176 = vmatprep.subr.bf16.mxu0 0
    %2177 = vmatpush1.bf16.msra.mxu0 0
    %2178 = vmatprep.subr.bf16.mxu0 0
    %2179 = vmatpush1.bf16.msra.mxu0 0
    %2180 = vmatprep.mubr.bf16.mxu0 0
    %2181 = vmatmul.mubr.bf16.gmra.mrb[0].mxu0 %v2146
    %v2182 = vpop.f32.mrb[0].mxu0
    %v2183 = vadd.f32 %v2128, %v2182
    %v2184 = vpop.f32.mrb[0].mxu0
    %v2185 = vpop.f32.mrb[0].mxu0
    %v2186 = vadd.f32 %v2128, %v2185
    %v2187 = vpop.f32.mrb[0].mxu0
    %2188 = vdwg.mxu0
    %vm2189 = vcmp.ge.f32.partialorder %v2183, 0.0
    %vm2190 = vcmp.ge.f32.partialorder %v2186, 0.0
    %v2191 = vmul.f32 %v2183, 0.01
    %v2192 = vmul.f32 %v2186, 0.01
    %v2193 = vsel %vm2189, %v2183, %v2191
    %v2194 = vsel %vm2190, %v2186, %v2192
    %v2195 = vlaneseq
    %v2196 = vand.u32 %v2195, 127
    %v2197 = vlaneseq
    %v2198 = vshrl.u32 %v2197, 7
    %v2199 = vadd.s32 %v2198, 8
    %vm2200 = vcmp.lt.s32.totalorder %v2196, 8
    %vm2201 = vcmp.lt.s32.totalorder %v2198, 4
    %vm2202 = vcmp.lt.s32.totalorder %v2199, 4
    %vm2203 = vmand %vm2200, %vm2201
    %vm2204 = vmand %vm2200, %vm2202
    %v2205 = vsel %vm2203, %v2193, 0.0
    %v2206 = vsel %vm2204, %v2194, 0.0
    %v2207 = vadd.f32 %v2205, %v2206
    %2208 = vadd.xlane.f32.xlu0 %v2207
    %v2209 = vpop.xlane.xlu0 %2208
    %v2210 = vrot.slane %v2209, 4
    %v2211 = vadd.f32 %v2209, %v2210
    %v2212 = vrot.slane %v2211, 2
    %v2213 = vadd.f32 %v2211, %v2212
    %v2214 = vrot.slane %v2213, 1
    %v2215 = vadd.f32 %v2213, %v2214
    %s2216 = vtos %v2215
    %2218 = vset.pattern.permute.xlu0 8
    %2219 = vperm.xlu0 %2218, %v2193
    %v2220 = vpop.permute.xlu0 %2219
    %2223 = vset.pattern.permute.xlu0 8
    %2224 = vperm.xlu0 %2223, %v2194
    %v2225 = vpop.permute.xlu0 %2224
    %v2227 = vadd.f32 %v2220, %v2193
    %v2228 = vadd.f32 %v2225, %v2194
    %v2229 = vrcp.pop 8.0
    %s2230 = vtos %v2229
    %s2231 = smul.f32 %s2216, %s2230
    %v2232 = vstv %s2231
    %v2233 = vadd.f32 %v2227, %v2232
    %v2234 = vadd.f32 %v2228, %v2232
    %2235 = vst [vmem:[#allocation3] sm:$0xff] %v2233
    %2236 = vst [vmem:[#allocation3 + $0x8] sm:$0xff] %v2234
    // Predicated region
    $region38: #{tpu_custom_call.1} parent=1 // pred_check
      _
    $region39: #{tpu_custom_call.1} parent=1 // pred_check_branch
      %2238 = sbr.rel (0) target = $region41
    $region40: #{tpu_custom_call.1} parent=1 // pred_region
      %s2240 = ssub.s32 256, 256
      %2241 = vsyncadd [#allocation4], %s2240
      %s2242 = sshll.u32 [#allocation3], 4
      %s2243 = int_to_ptr.vmem [resolvable:$true] %s2242
      %2248 = dma.vmem_to_hbm [thread:$0]  %s2243, 256, %s9, [#allocation4], 128, 128, 8
    $region41: #{tpu_custom_call.1} parent=1 // pred_fallthru
      _
    // Predicated region
    $region42: #{tpu_custom_call.1} parent=1 // pred_check
      _
    $region43: #{tpu_custom_call.1} parent=1 // pred_check_branch
      %2250 = sbr.rel (0) target = $region45
    $region44: #{tpu_custom_call.1} parent=1 // pred_region
      %2251 = dma.done [#allocation4], 256
    $region45: #{tpu_custom_call.1} parent=1 // pred_fallthru
      _
    %2252 = vsyncpa [#allocation4], 1

</llo_original>
